<compile_context>
chip_gen: v7x
topology: tpu7x:2x2x1
jax: 0.10.0
libtpu: 0.0.40
codegen_flags: <defaults>
</compile_context>

<pallas_src>
import functools

import jax
import jax.numpy as jnp
from jax import lax
from jax.experimental import pallas as pl
from jax.experimental.pallas import tpu as pltpu


# 3x3 tap offsets (dy, dx), tap index t = (dy+1)*3 + (dx+1), matching a weight
# reshaped OIHW -> [Cout, 3, 3, Cin] -> [Cout, 9*Cin] (tap-major, cin-minor).
_TAPS = ((-1, -1), (-1, 0), (-1, 1),
         (0, -1), (0, 0), (0, 1),
         (1, -1), (1, 0), (1, 1))


def _mish(x):
    """x * tanh(softplus(x)) with a single transcendental.

    With t = exp(x):  tanh(softplus(x)) = (t^2 + 2t) / (t^2 + 2t + 2).
    Using u = exp(-|x|) (never overflows):
      x <= 0:  (u^2 + 2u) / (u^2 + 2u + 2)
      x  > 0:  (1 + 2u)   / (1 + 2u + 2u^2)
    """
    u = jnp.exp(-jnp.abs(x))
    u2 = u * u
    pos = x > 0
    num = jnp.where(pos, 1.0 + 2.0 * u, u2 + 2.0 * u)
    den = jnp.where(pos, 1.0 + 2.0 * u + 2.0 * u2, u2 + 2.0 * u + 2.0)
    return x * num * pl.reciprocal(den, approx=True)


def _grid_encoder_kernel(H, W, bblk, cins,
                         x_ref, w1_ref, b1_ref, w2_ref, b2_ref, w3_ref, b3_ref,
                         out_ref, pad_ref, patch_ref):
    """Processes `bblk` images per grid step, entirely in VMEM.

    x_ref     : [bblk, C0, HW]   input images (channels on sublanes, pixels on lanes)
    w*_ref    : [Cout, 9*Cin]    BN-folded im2col conv weights
    b*_ref    : [Cout, 1]        BN-folded biases (f32)
    out_ref   : [bblk, C3, 1]    pooled embeddings
    pad_ref   : [CMAX, HW+2W+2]  zero-halo padded feature-map scratch
    patch_ref : [9*CMAX, HW]     im2col patch-matrix scratch
    """
    HW = H * W
    PAD0 = W + 1                       # left halo width (= right halo width)
    PADW = pad_ref.shape[1]
    CMAX = pad_ref.shape[0]
    cdtype = pad_ref.dtype

    # Zero only the halo lane strips.  The interior is fully overwritten by each
    # layer's staging store and the halos are never written, so one zeroing per
    # grid step covers every image / layer in this step (megacore-safe).
    pad_ref[:, :PAD0] = jnp.zeros((CMAX, PAD0), cdtype)
    pad_ref[:, PAD0 + HW:] = jnp.zeros((CMAX, PADW - PAD0 - HW), cdtype)

    # Horizontal-wrap masks, hoisted: built once, reused by all taps / layers.
    xcoord = lax.broadcasted_iota(jnp.int32, (1, HW), 1) % W
    mask_l = jnp.where(xcoord > 0, 1.0, 0.0).astype(cdtype)       # for dx == -1
    mask_r = jnp.where(xcoord < W - 1, 1.0, 0.0).astype(cdtype)   # for dx == +1

    def conv3x3_bn_mish(fmap, w_ref, b_ref, cin):
        """[cin, HW] -> mish(BN(conv3x3(fmap))) : [cout, HW] (f32)."""
        # Stage the feature map into the zero-halo padded scratch.
        pad_ref[:cin, PAD0:PAD0 + HW] = fmap.astype(cdtype)
        # Build the [9*cin, HW] im2col matrix from 9 statically shifted slices.
        for t, (dy, dx) in enumerate(_TAPS):
            start = PAD0 + dy * W + dx
            patch = pad_ref[:cin, start:start + HW]
            if dx == -1:
                patch = patch * mask_l
            elif dx == 1:
                patch = patch * mask_r
            patch_ref[t * cin:(t + 1) * cin, :] = patch
        # One MXU matmul per layer, f32 accumulation.
        acc = jnp.dot(w_ref[...], patch_ref[:9 * cin, :],
                      preferred_element_type=jnp.float32)
        return _mish(acc + b_ref[...])

    for img in range(bblk):                                 # static unroll
        h = x_ref[img]                                      # [C0, HW]
        h = conv3x3_bn_mish(h, w1_ref, b1_ref, cins[0])     # [C1, HW]
        h = conv3x3_bn_mish(h, w2_ref, b2_ref, cins[1])     # [C2, HW]
        h = conv3x3_bn_mish(h, w3_ref, b3_ref, cins[2])     # [C3, HW]
        # AdaptiveAvgPool2d(1) + Flatten(1) == mean over all pixels (lane reduce).
        out_ref[img] = jnp.mean(h, axis=1, keepdims=True).astype(out_ref.dtype)


def _pick_block_b(batch, cap=8):
    """Largest divisor of `batch` that is <= cap while keeping >= 2 grid steps
    (so both v7x TensorCores stay loaded when batch >= 2)."""
    limit = min(cap, max(1, batch // 2))
    for cand in range(limit, 0, -1):
        if batch % cand == 0:
            return cand
    return 1


def grid_encoder_forward(x_nchw, params, *, eps=1e-5,
                         compute_dtype=jnp.float32, block_b=None):
    """Pallas forward of GridEncoder.  x_nchw: [B, C_in, H, W] (PyTorch layout)."""
    B, C0, H, W = x_nchw.shape
    HW = H * W

    def fold(w_oihw, b, gamma, beta, mean, var):
        # Fold Conv2d bias + inference BatchNorm2d into one affine per layer:
        #   BN(conv(x; w) + b) = conv(x; w*s) + ((b - mean)*s + beta),
        #   s = gamma / sqrt(var + eps)
        scale = gamma * lax.rsqrt(var + eps)                            # [Cout]
        cout, cin = w_oihw.shape[0], w_oihw.shape[1]
        w_s = w_oihw * scale[:, None, None, None]                       # OIHW
        # OIHW -> [Cout, ky, kx, Cin] -> [Cout, 9*Cin] (tap-major, cin-minor;
        # matches the patch-matrix row order built in-kernel).
        w_eff = jnp.transpose(w_s, (0, 2, 3, 1)).reshape(cout, 9 * cin)
        b_eff = (b - mean) * scale + beta
        return (w_eff.astype(compute_dtype),
                b_eff.reshape(cout, 1).astype(jnp.float32))

    w1, b1 = fold(params["w1"], params["b1"], params["gamma1"], params["beta1"],
                  params["mean1"], params["var1"])
    w2, b2 = fold(params["w2"], params["b2"], params["gamma2"], params["beta2"],
                  params["mean2"], params["var2"])
    w3, b3 = fold(params["w3"], params["b3"], params["gamma3"], params["beta3"],
                  params["mean3"], params["var3"])

    C1, C2, C3 = w1.shape[0], w2.shape[0], w3.shape[0]
    cins = (C0, C1, C2)
    cmax = max(cins)                  # widest conv *input* staged in the scratch
    padw = HW + 2 * (W + 1)

    bblk = block_b if block_b is not None else _pick_block_b(B)
    assert B % bblk == 0, (B, bblk)

    # NCHW is already channel-major: just flatten spatial dims onto the lanes.
    x_flat = x_nchw.reshape(B, C0, HW).astype(compute_dtype)

    kernel = functools.partial(_grid_encoder_kernel, H, W, bblk, cins)

    out = pl.pallas_call(
        kernel,
        out_shape=jax.ShapeDtypeStruct((B, C3, 1), jnp.float32),
        grid_spec=pltpu.PrefetchScalarGridSpec(
            num_scalar_prefetch=0,
            grid=(B // bblk,),
            in_specs=[
                pl.BlockSpec((bblk, C0, HW), lambda b: (b, 0, 0)),  # images
                pl.BlockSpec((C1, 9 * C0), lambda b: (0, 0)),       # W1 (folded)
                pl.BlockSpec((C1, 1), lambda b: (0, 0)),            # b1
                pl.BlockSpec((C2, 9 * C1), lambda b: (0, 0)),       # W2
                pl.BlockSpec((C2, 1), lambda b: (0, 0)),            # b2
                pl.BlockSpec((C3, 9 * C2), lambda b: (0, 0)),       # W3
                pl.BlockSpec((C3, 1), lambda b: (0, 0)),            # b3
            ],
            out_specs=pl.BlockSpec((bblk, C3, 1), lambda b: (b, 0, 0)),
            scratch_shapes=[
                pltpu.VMEM((cmax, padw), compute_dtype),     # padded feature map
                pltpu.VMEM((9 * cmax, HW), compute_dtype),   # im2col patches
            ],
        ),
        compiler_params=pltpu.CompilerParams(
            dimension_semantics=("parallel",)),   # batch shards across TCs (v7x)
    )(x_flat, w1, b1, w2, b2, w3, b3)

    return out.reshape(B, C3)


def _reference(x_nchw, params, eps=1e-5):
    """Pure-JAX reference: (Conv2d -> BatchNorm2d(eval) -> Mish) x3 -> GAP -> Flatten."""
    h = x_nchw.astype(jnp.float32)
    for i in (1, 2, 3):
        h = lax.conv_general_dilated(
            h, params[f"w{i}"].astype(jnp.float32),
            window_strides=(1, 1), padding=((1, 1), (1, 1)),
            dimension_numbers=("NCHW", "OIHW", "NCHW"),
            precision=lax.Precision.HIGHEST)
        h = h + params[f"b{i}"][None, :, None, None]
        s = params[f"gamma{i}"] * lax.rsqrt(params[f"var{i}"] + eps)
        h = (h - params[f"mean{i}"][None, :, None, None]) * s[None, :, None, None] \
            + params[f"beta{i}"][None, :, None, None]
        h = h * jnp.tanh(jax.nn.softplus(h))
    return jnp.mean(h, axis=(2, 3))


if __name__ == "__main__":
    key = jax.random.PRNGKey(0)

    # Small shapes consistent with the module: node_grid_dim=4, node_grid_emb=32,
    # 16x16 grids, batch 2.
    B, C_in, H, W = 2, 4, 16, 16
    emb = 32
    C1, C2, C3 = emb // 4, emb // 2, emb

    keys = iter(jax.random.split(key, 32))

    def nrm(shape, s=0.1):
        return s * jax.random.normal(next(keys), shape, jnp.float32)

    params = {}
    for i, (ci, co) in enumerate(((C_in, C1), (C1, C2), (C2, C3)), start=1):
        params[f"w{i}"] = nrm((co, ci, 3, 3), 0.3)          # OIHW conv weights
        params[f"b{i}"] = nrm((co,), 0.1)                   # conv bias
        params[f"gamma{i}"] = 1.0 + nrm((co,), 0.1)         # BN weight
        params[f"beta{i}"] = nrm((co,), 0.1)                # BN bias
        params[f"mean{i}"] = nrm((co,), 0.1)                # BN running mean
        params[f"var{i}"] = 1.0 + jnp.abs(nrm((co,), 0.1))  # BN running var

    x = jax.random.normal(next(keys), (B, C_in, H, W), jnp.float32)

    out = grid_encoder_forward(x, params)
    jax.block_until_ready(out)
    assert out.shape == (B, C3), out.shape

    ref = _reference(x, params)
    max_err = float(jnp.max(jnp.abs(out - ref)))
    assert max_err < 5e-2, f"kernel/reference mismatch: max abs err {max_err}"

    print("KERNEL_OK")
</pallas_src>

<mosaic_0001>
module attributes {stable_mosaic.version = 11 : i64} {
  func.func @_grid_encoder_kernel(%arg0: i32, %arg1: memref<1x4x256xf32, #tpu.memory_space<vmem>>, %arg2: memref<8x36xf32, #tpu.memory_space<vmem>>, %arg3: memref<8x1xf32, #tpu.memory_space<vmem>>, %arg4: memref<16x72xf32, #tpu.memory_space<vmem>>, %arg5: memref<16x1xf32, #tpu.memory_space<vmem>>, %arg6: memref<32x144xf32, #tpu.memory_space<vmem>>, %arg7: memref<32x1xf32, #tpu.memory_space<vmem>>, %arg8: memref<1x32x1xf32, #tpu.memory_space<vmem>>, %arg9: memref<16x290xf32, #tpu.memory_space<vmem>>, %arg10: memref<144x256xf32, #tpu.memory_space<vmem>>) attributes {dimension_semantics = [#tpu.dimension_semantics<parallel>], iteration_bounds = array<i64: 2>, scalar_prefetch = 0 : i64, scratch_operands = 2 : i64, tpu.core_type = #tpu.core_type<tc>, window_params = [{transform_indices = @transform_0, window_bounds = array<i64: 1, 4, 256>}, {pipeline_mode = #tpu.pipeline_mode<synchronous>, transform_indices = @transform_1, window_bounds = array<i64: 8, 36>}, {pipeline_mode = #tpu.pipeline_mode<synchronous>, transform_indices = @transform_2, window_bounds = array<i64: 8, 1>}, {pipeline_mode = #tpu.pipeline_mode<synchronous>, transform_indices = @transform_3, window_bounds = array<i64: 16, 72>}, {pipeline_mode = #tpu.pipeline_mode<synchronous>, transform_indices = @transform_4, window_bounds = array<i64: 16, 1>}, {pipeline_mode = #tpu.pipeline_mode<synchronous>, transform_indices = @transform_5, window_bounds = array<i64: 32, 144>}, {pipeline_mode = #tpu.pipeline_mode<synchronous>, transform_indices = @transform_6, window_bounds = array<i64: 32, 1>}, {transform_indices = @transform_7, window_bounds = array<i64: 1, 32, 1>}]} {
    %cst = arith.constant 0.000000e+00 : f32
    %0 = vector.broadcast %cst : f32 to vector<16x17xf32>
    %c0 = arith.constant 0 : index
    %c0_0 = arith.constant 0 : index
    %1 = vector.load %arg9[%c0, %c0_0] : memref<16x290xf32, #tpu.memory_space<vmem>>, vector<16x17xf32>
    tpu.vector_store %arg9[%c0, %c0_0], %0 {strides = array<i32>} : memref<16x290xf32, #tpu.memory_space<vmem>>, vector<16x17xf32>,
    %cst_1 = arith.constant 0.000000e+00 : f32
    %2 = vector.broadcast %cst_1 : f32 to vector<16x17xf32>
    %c0_2 = arith.constant 0 : index
    %c273 = arith.constant 273 : index
    %3 = vector.load %arg9[%c0_2, %c273] : memref<16x290xf32, #tpu.memory_space<vmem>>, vector<16x17xf32>
    tpu.vector_store %arg9[%c0_2, %c273], %2 {strides = array<i32>} : memref<16x290xf32, #tpu.memory_space<vmem>>, vector<16x17xf32>,
    %4 = tpu.iota {dimensions = array<i32: 1>} : vector<1x256xi32>
    %c16_i32 = arith.constant 16 : i32
    %c0_i32 = arith.constant 0 : i32
    %5 = arith.cmpi eq, %c16_i32, %c0_i32 : i32
    %c1_i32 = arith.constant 1 : i32
    %6 = arith.select %5, %c1_i32, %c16_i32 : i32
    %7 = vector.broadcast %6 : i32 to vector<1x256xi32>
    %8 = arith.remsi %4, %7 : vector<1x256xi32>
    %c0_i32_3 = arith.constant 0 : i32
    %9 = vector.broadcast %c0_i32_3 : i32 to vector<1x256xi32>
    %10 = arith.cmpi ne, %8, %9 : vector<1x256xi32>
    %c0_i32_4 = arith.constant 0 : i32
    %11 = vector.broadcast %c0_i32_4 : i32 to vector<1x256xi32>
    %12 = arith.cmpi slt, %8, %11 : vector<1x256xi32>
    %c0_i32_5 = arith.constant 0 : i32
    %13 = arith.cmpi slt, %6, %c0_i32_5 : i32
    %14 = vector.broadcast %13 : i1 to vector<1x256xi1>
    %15 = vector.broadcast %14 : vector<1x256xi1> to vector<1x256xi1>
    %16 = arith.xori %12, %15 : vector<1x256xi1>
    %17 = arith.andi %16, %10 : vector<1x256xi1>
    %18 = vector.broadcast %6 : i32 to vector<1x256xi32>
    %19 = arith.addi %8, %18 : vector<1x256xi32>
    %20 = arith.select %17, %19, %8 : vector<1x256xi1>, vector<1x256xi32>
    %c0_i32_6 = arith.constant 0 : i32
    %21 = vector.broadcast %c0_i32_6 : i32 to vector<1x256xi32>
    %22 = arith.cmpi sgt, %20, %21 : vector<1x256xi32>
    %cst_7 = arith.constant 1.000000e+00 : f32
    %cst_8 = arith.constant 0.000000e+00 : f32
    %23 = vector.broadcast %cst_7 : f32 to vector<1x256xf32>
    %24 = vector.broadcast %cst_8 : f32 to vector<1x256xf32>
    %25 = arith.select %22, %23, %24 : vector<1x256xi1>, vector<1x256xf32>
    %c15_i32 = arith.constant 15 : i32
    %26 = vector.broadcast %c15_i32 : i32 to vector<1x256xi32>
    %27 = arith.cmpi slt, %20, %26 : vector<1x256xi32>
    %cst_9 = arith.constant 1.000000e+00 : f32
    %cst_10 = arith.constant 0.000000e+00 : f32
    %28 = vector.broadcast %cst_9 : f32 to vector<1x256xf32>
    %29 = vector.broadcast %cst_10 : f32 to vector<1x256xf32>
    %30 = arith.select %27, %28, %29 : vector<1x256xi1>, vector<1x256xf32>
    %c0_11 = arith.constant 0 : index
    %c0_12 = arith.constant 0 : index
    %c0_13 = arith.constant 0 : index
    %31 = vector.load %arg1[%c0_11, %c0_12, %c0_13] : memref<1x4x256xf32, #tpu.memory_space<vmem>>, vector<1x4x256xf32>
    %32 = vector.shape_cast %31 : vector<1x4x256xf32> to vector<4x256xf32>
    %c0_14 = arith.constant 0 : index
    %c17 = arith.constant 17 : index
    %33 = vector.load %arg9[%c0_14, %c17] : memref<16x290xf32, #tpu.memory_space<vmem>>, vector<4x256xf32>
    tpu.vector_store %arg9[%c0_14, %c17], %32 {strides = array<i32>} : memref<16x290xf32, #tpu.memory_space<vmem>>, vector<4x256xf32>,
    %c0_15 = arith.constant 0 : index
    %c0_16 = arith.constant 0 : index
    %34 = vector.load %arg9[%c0_15, %c0_16] : memref<16x290xf32, #tpu.memory_space<vmem>>, vector<4x256xf32>
    %35 = vector.broadcast %25 : vector<1x256xf32> to vector<4x256xf32>
    %36 = arith.mulf %34, %35 : vector<4x256xf32>
    %c0_17 = arith.constant 0 : index
    %c0_18 = arith.constant 0 : index
    %37 = vector.load %arg10[%c0_17, %c0_18] : memref<144x256xf32, #tpu.memory_space<vmem>>, vector<4x256xf32>
    tpu.vector_store %arg10[%c0_17, %c0_18], %36 {strides = array<i32>} : memref<144x256xf32, #tpu.memory_space<vmem>>, vector<4x256xf32>,
    %c0_19 = arith.constant 0 : index
    %c1 = arith.constant 1 : index
    %38 = vector.load %arg9[%c0_19, %c1] : memref<16x290xf32, #tpu.memory_space<vmem>>, vector<4x256xf32>
    %c4 = arith.constant 4 : index
    %c0_20 = arith.constant 0 : index
    %39 = vector.load %arg10[%c4, %c0_20] : memref<144x256xf32, #tpu.memory_space<vmem>>, vector<4x256xf32>
    tpu.vector_store %arg10[%c4, %c0_20], %38 {strides = array<i32>} : memref<144x256xf32, #tpu.memory_space<vmem>>, vector<4x256xf32>,
    %c0_21 = arith.constant 0 : index
    %c2 = arith.constant 2 : index
    %40 = vector.load %arg9[%c0_21, %c2] : memref<16x290xf32, #tpu.memory_space<vmem>>, vector<4x256xf32>
    %41 = vector.broadcast %30 : vector<1x256xf32> to vector<4x256xf32>
    %42 = arith.mulf %40, %41 : vector<4x256xf32>
    %c8 = arith.constant 8 : index
    %c0_22 = arith.constant 0 : index
    %43 = vector.load %arg10[%c8, %c0_22] : memref<144x256xf32, #tpu.memory_space<vmem>>, vector<4x256xf32>
    tpu.vector_store %arg10[%c8, %c0_22], %42 {strides = array<i32>} : memref<144x256xf32, #tpu.memory_space<vmem>>, vector<4x256xf32>,
    %c0_23 = arith.constant 0 : index
    %c16 = arith.constant 16 : index
    %44 = vector.load %arg9[%c0_23, %c16] : memref<16x290xf32, #tpu.memory_space<vmem>>, vector<4x256xf32>
    %45 = vector.broadcast %25 : vector<1x256xf32> to vector<4x256xf32>
    %46 = arith.mulf %44, %45 : vector<4x256xf32>
    %c12 = arith.constant 12 : index
    %c0_24 = arith.constant 0 : index
    %47 = vector.load %arg10[%c12, %c0_24] : memref<144x256xf32, #tpu.memory_space<vmem>>, vector<4x256xf32>
    tpu.vector_store %arg10[%c12, %c0_24], %46 {strides = array<i32>} : memref<144x256xf32, #tpu.memory_space<vmem>>, vector<4x256xf32>,
    %c0_25 = arith.constant 0 : index
    %c17_26 = arith.constant 17 : index
    %48 = vector.load %arg9[%c0_25, %c17_26] : memref<16x290xf32, #tpu.memory_space<vmem>>, vector<4x256xf32>
    %c16_27 = arith.constant 16 : index
    %c0_28 = arith.constant 0 : index
    %49 = vector.load %arg10[%c16_27, %c0_28] : memref<144x256xf32, #tpu.memory_space<vmem>>, vector<4x256xf32>
    tpu.vector_store %arg10[%c16_27, %c0_28], %48 {strides = array<i32>} : memref<144x256xf32, #tpu.memory_space<vmem>>, vector<4x256xf32>,
    %c0_29 = arith.constant 0 : index
    %c18 = arith.constant 18 : index
    %50 = vector.load %arg9[%c0_29, %c18] : memref<16x290xf32, #tpu.memory_space<vmem>>, vector<4x256xf32>
    %51 = vector.broadcast %30 : vector<1x256xf32> to vector<4x256xf32>
    %52 = arith.mulf %50, %51 : vector<4x256xf32>
    %c20 = arith.constant 20 : index
    %c0_30 = arith.constant 0 : index
    %53 = vector.load %arg10[%c20, %c0_30] : memref<144x256xf32, #tpu.memory_space<vmem>>, vector<4x256xf32>
    tpu.vector_store %arg10[%c20, %c0_30], %52 {strides = array<i32>} : memref<144x256xf32, #tpu.memory_space<vmem>>, vector<4x256xf32>,
    %c0_31 = arith.constant 0 : index
    %c32 = arith.constant 32 : index
    %54 = vector.load %arg9[%c0_31, %c32] : memref<16x290xf32, #tpu.memory_space<vmem>>, vector<4x256xf32>
    %55 = vector.broadcast %25 : vector<1x256xf32> to vector<4x256xf32>
    %56 = arith.mulf %54, %55 : vector<4x256xf32>
    %c24 = arith.constant 24 : index
    %c0_32 = arith.constant 0 : index
    %57 = vector.load %arg10[%c24, %c0_32] : memref<144x256xf32, #tpu.memory_space<vmem>>, vector<4x256xf32>
    tpu.vector_store %arg10[%c24, %c0_32], %56 {strides = array<i32>} : memref<144x256xf32, #tpu.memory_space<vmem>>, vector<4x256xf32>,
    %c0_33 = arith.constant 0 : index
    %c33 = arith.constant 33 : index
    %58 = vector.load %arg9[%c0_33, %c33] : memref<16x290xf32, #tpu.memory_space<vmem>>, vector<4x256xf32>
    %c28 = arith.constant 28 : index
    %c0_34 = arith.constant 0 : index
    %59 = vector.load %arg10[%c28, %c0_34] : memref<144x256xf32, #tpu.memory_space<vmem>>, vector<4x256xf32>
    tpu.vector_store %arg10[%c28, %c0_34], %58 {strides = array<i32>} : memref<144x256xf32, #tpu.memory_space<vmem>>, vector<4x256xf32>,
    %c0_35 = arith.constant 0 : index
    %c34 = arith.constant 34 : index
    %60 = vector.load %arg9[%c0_35, %c34] : memref<16x290xf32, #tpu.memory_space<vmem>>, vector<4x256xf32>
    %61 = vector.broadcast %30 : vector<1x256xf32> to vector<4x256xf32>
    %62 = arith.mulf %60, %61 : vector<4x256xf32>
    %c32_36 = arith.constant 32 : index
    %c0_37 = arith.constant 0 : index
    %63 = vector.load %arg10[%c32_36, %c0_37] : memref<144x256xf32, #tpu.memory_space<vmem>>, vector<4x256xf32>
    tpu.vector_store %arg10[%c32_36, %c0_37], %62 {strides = array<i32>} : memref<144x256xf32, #tpu.memory_space<vmem>>, vector<4x256xf32>,
    %c0_38 = arith.constant 0 : index
    %c0_39 = arith.constant 0 : index
    %64 = vector.load %arg2[%c0_38, %c0_39] : memref<8x36xf32, #tpu.memory_space<vmem>>, vector<8x36xf32>
    %c0_40 = arith.constant 0 : index
    %c0_41 = arith.constant 0 : index
    %65 = vector.load %arg10[%c0_40, %c0_41] : memref<144x256xf32, #tpu.memory_space<vmem>>, vector<36x256xf32>
    %cst_42 = arith.constant dense<0.000000e+00> : vector<8x256xf32>
    %66 = tpu.matmul %64, %65, %cst_42 {dimension_numbers = #tpu.dot_dimension_numbers<[1], [0], [0], [1], [0, 0, 1, 1], [], []>} : vector<8x36xf32>, vector<36x256xf32>, vector<8x256xf32> -> vector<8x256xf32>
    %c0_43 = arith.constant 0 : index
    %c0_44 = arith.constant 0 : index
    %67 = vector.load %arg3[%c0_43, %c0_44] : memref<8x1xf32, #tpu.memory_space<vmem>>, vector<8x1xf32>
    %68 = vector.broadcast %67 : vector<8x1xf32> to vector<8x256xf32>
    %69 = arith.addf %66, %68 : vector<8x256xf32>
    %70 = math.absf %69 : vector<8x256xf32>
    %cst_45 = arith.constant 0.000000e+00 : f32
    %71 = vector.broadcast %cst_45 : f32 to vector<8x256xf32>
    %72 = arith.subf %71, %70 : vector<8x256xf32>
    %73 = math.exp %72 : vector<8x256xf32>
    %74 = arith.mulf %73, %73 : vector<8x256xf32>
    %cst_46 = arith.constant 0.000000e+00 : f32
    %75 = vector.broadcast %cst_46 : f32 to vector<8x256xf32>
    %76 = arith.cmpf ogt, %69, %75 : vector<8x256xf32>
    %cst_47 = arith.constant 2.000000e+00 : f32
    %77 = vector.broadcast %cst_47 : f32 to vector<8x256xf32>
    %78 = arith.mulf %77, %73 : vector<8x256xf32>
    %cst_48 = arith.constant 1.000000e+00 : f32
    %79 = vector.broadcast %cst_48 : f32 to vector<8x256xf32>
    %80 = arith.addf %79, %78 : vector<8x256xf32>
    %cst_49 = arith.constant 2.000000e+00 : f32
    %81 = vector.broadcast %cst_49 : f32 to vector<8x256xf32>
    %82 = arith.mulf %81, %73 : vector<8x256xf32>
    %83 = arith.addf %74, %82 : vector<8x256xf32>
    %84 = arith.select %76, %80, %83 : vector<8x256xi1>, vector<8x256xf32>
    %cst_50 = arith.constant 2.000000e+00 : f32
    %85 = vector.broadcast %cst_50 : f32 to vector<8x256xf32>
    %86 = arith.mulf %85, %73 : vector<8x256xf32>
    %cst_51 = arith.constant 1.000000e+00 : f32
    %87 = vector.broadcast %cst_51 : f32 to vector<8x256xf32>
    %88 = arith.addf %87, %86 : vector<8x256xf32>
    %cst_52 = arith.constant 2.000000e+00 : f32
    %89 = vector.broadcast %cst_52 : f32 to vector<8x256xf32>
    %90 = arith.mulf %89, %74 : vector<8x256xf32>
    %91 = arith.addf %88, %90 : vector<8x256xf32>
    %cst_53 = arith.constant 2.000000e+00 : f32
    %92 = vector.broadcast %cst_53 : f32 to vector<8x256xf32>
    %93 = arith.mulf %92, %73 : vector<8x256xf32>
    %94 = arith.addf %74, %93 : vector<8x256xf32>
    %cst_54 = arith.constant 2.000000e+00 : f32
    %95 = vector.broadcast %cst_54 : f32 to vector<8x256xf32>
    %96 = arith.addf %94, %95 : vector<8x256xf32>
    %97 = arith.select %76, %91, %96 : vector<8x256xi1>, vector<8x256xf32>
    %98 = arith.mulf %69, %84 : vector<8x256xf32>
    %99 = tpu.reciprocal %97 {approx = true} : vector<8x256xf32> -> vector<8x256xf32>
    %100 = arith.mulf %98, %99 : vector<8x256xf32>
    %c0_55 = arith.constant 0 : index
    %c17_56 = arith.constant 17 : index
    %101 = vector.load %arg9[%c0_55, %c17_56] : memref<16x290xf32, #tpu.memory_space<vmem>>, vector<8x256xf32>
    tpu.vector_store %arg9[%c0_55, %c17_56], %100 {strides = array<i32>} : memref<16x290xf32, #tpu.memory_space<vmem>>, vector<8x256xf32>,
    %c0_57 = arith.constant 0 : index
    %c0_58 = arith.constant 0 : index
    %102 = vector.load %arg9[%c0_57, %c0_58] : memref<16x290xf32, #tpu.memory_space<vmem>>, vector<8x256xf32>
    %103 = vector.broadcast %25 : vector<1x256xf32> to vector<8x256xf32>
    %104 = arith.mulf %102, %103 : vector<8x256xf32>
    %c0_59 = arith.constant 0 : index
    %c0_60 = arith.constant 0 : index
    %105 = vector.load %arg10[%c0_59, %c0_60] : memref<144x256xf32, #tpu.memory_space<vmem>>, vector<8x256xf32>
    tpu.vector_store %arg10[%c0_59, %c0_60], %104 {strides = array<i32>} : memref<144x256xf32, #tpu.memory_space<vmem>>, vector<8x256xf32>,
    %c0_61 = arith.constant 0 : index
    %c1_62 = arith.constant 1 : index
    %106 = vector.load %arg9[%c0_61, %c1_62] : memref<16x290xf32, #tpu.memory_space<vmem>>, vector<8x256xf32>
    %c8_63 = arith.constant 8 : index
    %c0_64 = arith.constant 0 : index
    %107 = vector.load %arg10[%c8_63, %c0_64] : memref<144x256xf32, #tpu.memory_space<vmem>>, vector<8x256xf32>
    tpu.vector_store %arg10[%c8_63, %c0_64], %106 {strides = array<i32>} : memref<144x256xf32, #tpu.memory_space<vmem>>, vector<8x256xf32>,
    %c0_65 = arith.constant 0 : index
    %c2_66 = arith.constant 2 : index
    %108 = vector.load %arg9[%c0_65, %c2_66] : memref<16x290xf32, #tpu.memory_space<vmem>>, vector<8x256xf32>
    %109 = vector.broadcast %30 : vector<1x256xf32> to vector<8x256xf32>
    %110 = arith.mulf %108, %109 : vector<8x256xf32>
    %c16_67 = arith.constant 16 : index
    %c0_68 = arith.constant 0 : index
    %111 = vector.load %arg10[%c16_67, %c0_68] : memref<144x256xf32, #tpu.memory_space<vmem>>, vector<8x256xf32>
    tpu.vector_store %arg10[%c16_67, %c0_68], %110 {strides = array<i32>} : memref<144x256xf32, #tpu.memory_space<vmem>>, vector<8x256xf32>,
    %c0_69 = arith.constant 0 : index
    %c16_70 = arith.constant 16 : index
    %112 = vector.load %arg9[%c0_69, %c16_70] : memref<16x290xf32, #tpu.memory_space<vmem>>, vector<8x256xf32>
    %113 = vector.broadcast %25 : vector<1x256xf32> to vector<8x256xf32>
    %114 = arith.mulf %112, %113 : vector<8x256xf32>
    %c24_71 = arith.constant 24 : index
    %c0_72 = arith.constant 0 : index
    %115 = vector.load %arg10[%c24_71, %c0_72] : memref<144x256xf32, #tpu.memory_space<vmem>>, vector<8x256xf32>
    tpu.vector_store %arg10[%c24_71, %c0_72], %114 {strides = array<i32>} : memref<144x256xf32, #tpu.memory_space<vmem>>, vector<8x256xf32>,
    %c0_73 = arith.constant 0 : index
    %c17_74 = arith.constant 17 : index
    %116 = vector.load %arg9[%c0_73, %c17_74] : memref<16x290xf32, #tpu.memory_space<vmem>>, vector<8x256xf32>
    %c32_75 = arith.constant 32 : index
    %c0_76 = arith.constant 0 : index
    %117 = vector.load %arg10[%c32_75, %c0_76] : memref<144x256xf32, #tpu.memory_space<vmem>>, vector<8x256xf32>
    tpu.vector_store %arg10[%c32_75, %c0_76], %116 {strides = array<i32>} : memref<144x256xf32, #tpu.memory_space<vmem>>, vector<8x256xf32>,
    %c0_77 = arith.constant 0 : index
    %c18_78 = arith.constant 18 : index
    %118 = vector.load %arg9[%c0_77, %c18_78] : memref<16x290xf32, #tpu.memory_space<vmem>>, vector<8x256xf32>
    %119 = vector.broadcast %30 : vector<1x256xf32> to vector<8x256xf32>
    %120 = arith.mulf %118, %119 : vector<8x256xf32>
    %c40 = arith.constant 40 : index
    %c0_79 = arith.constant 0 : index
    %121 = vector.load %arg10[%c40, %c0_79] : memref<144x256xf32, #tpu.memory_space<vmem>>, vector<8x256xf32>
    tpu.vector_store %arg10[%c40, %c0_79], %120 {strides = array<i32>} : memref<144x256xf32, #tpu.memory_space<vmem>>, vector<8x256xf32>,
    %c0_80 = arith.constant 0 : index
    %c32_81 = arith.constant 32 : index
    %122 = vector.load %arg9[%c0_80, %c32_81] : memref<16x290xf32, #tpu.memory_space<vmem>>, vector<8x256xf32>
    %123 = vector.broadcast %25 : vector<1x256xf32> to vector<8x256xf32>
    %124 = arith.mulf %122, %123 : vector<8x256xf32>
    %c48 = arith.constant 48 : index
    %c0_82 = arith.constant 0 : index
    %125 = vector.load %arg10[%c48, %c0_82] : memref<144x256xf32, #tpu.memory_space<vmem>>, vector<8x256xf32>
    tpu.vector_store %arg10[%c48, %c0_82], %124 {strides = array<i32>} : memref<144x256xf32, #tpu.memory_space<vmem>>, vector<8x256xf32>,
    %c0_83 = arith.constant 0 : index
    %c33_84 = arith.constant 33 : index
    %126 = vector.load %arg9[%c0_83, %c33_84] : memref<16x290xf32, #tpu.memory_space<vmem>>, vector<8x256xf32>
    %c56 = arith.constant 56 : index
    %c0_85 = arith.constant 0 : index
    %127 = vector.load %arg10[%c56, %c0_85] : memref<144x256xf32, #tpu.memory_space<vmem>>, vector<8x256xf32>
    tpu.vector_store %arg10[%c56, %c0_85], %126 {strides = array<i32>} : memref<144x256xf32, #tpu.memory_space<vmem>>, vector<8x256xf32>,
    %c0_86 = arith.constant 0 : index
    %c34_87 = arith.constant 34 : index
    %128 = vector.load %arg9[%c0_86, %c34_87] : memref<16x290xf32, #tpu.memory_space<vmem>>, vector<8x256xf32>
    %129 = vector.broadcast %30 : vector<1x256xf32> to vector<8x256xf32>
    %130 = arith.mulf %128, %129 : vector<8x256xf32>
    %c64 = arith.constant 64 : index
    %c0_88 = arith.constant 0 : index
    %131 = vector.load %arg10[%c64, %c0_88] : memref<144x256xf32, #tpu.memory_space<vmem>>, vector<8x256xf32>
    tpu.vector_store %arg10[%c64, %c0_88], %130 {strides = array<i32>} : memref<144x256xf32, #tpu.memory_space<vmem>>, vector<8x256xf32>,
    %c0_89 = arith.constant 0 : index
    %c0_90 = arith.constant 0 : index
    %132 = vector.load %arg4[%c0_89, %c0_90] : memref<16x72xf32, #tpu.memory_space<vmem>>, vector<16x72xf32>
    %c0_91 = arith.constant 0 : index
    %c0_92 = arith.constant 0 : index
    %133 = vector.load %arg10[%c0_91, %c0_92] : memref<144x256xf32, #tpu.memory_space<vmem>>, vector<72x256xf32>
    %cst_93 = arith.constant dense<0.000000e+00> : vector<16x256xf32>
    %134 = tpu.matmul %132, %133, %cst_93 {dimension_numbers = #tpu.dot_dimension_numbers<[1], [0], [0], [1], [0, 0, 1, 1], [], []>} : vector<16x72xf32>, vector<72x256xf32>, vector<16x256xf32> -> vector<16x256xf32>
    %c0_94 = arith.constant 0 : index
    %c0_95 = arith.constant 0 : index
    %135 = vector.load %arg5[%c0_94, %c0_95] : memref<16x1xf32, #tpu.memory_space<vmem>>, vector<16x1xf32>
    %136 = vector.broadcast %135 : vector<16x1xf32> to vector<16x256xf32>
    %137 = arith.addf %134, %136 : vector<16x256xf32>
    %138 = math.absf %137 : vector<16x256xf32>
    %cst_96 = arith.constant 0.000000e+00 : f32
    %139 = vector.broadcast %cst_96 : f32 to vector<16x256xf32>
    %140 = arith.subf %139, %138 : vector<16x256xf32>
    %141 = math.exp %140 : vector<16x256xf32>
    %142 = arith.mulf %141, %141 : vector<16x256xf32>
    %cst_97 = arith.constant 0.000000e+00 : f32
    %143 = vector.broadcast %cst_97 : f32 to vector<16x256xf32>
    %144 = arith.cmpf ogt, %137, %143 : vector<16x256xf32>
    %cst_98 = arith.constant 2.000000e+00 : f32
    %145 = vector.broadcast %cst_98 : f32 to vector<16x256xf32>
    %146 = arith.mulf %145, %141 : vector<16x256xf32>
    %cst_99 = arith.constant 1.000000e+00 : f32
    %147 = vector.broadcast %cst_99 : f32 to vector<16x256xf32>
    %148 = arith.addf %147, %146 : vector<16x256xf32>
    %cst_100 = arith.constant 2.000000e+00 : f32
    %149 = vector.broadcast %cst_100 : f32 to vector<16x256xf32>
    %150 = arith.mulf %149, %141 : vector<16x256xf32>
    %151 = arith.addf %142, %150 : vector<16x256xf32>
    %152 = arith.select %144, %148, %151 : vector<16x256xi1>, vector<16x256xf32>
    %cst_101 = arith.constant 2.000000e+00 : f32
    %153 = vector.broadcast %cst_101 : f32 to vector<16x256xf32>
    %154 = arith.mulf %153, %141 : vector<16x256xf32>
    %cst_102 = arith.constant 1.000000e+00 : f32
    %155 = vector.broadcast %cst_102 : f32 to vector<16x256xf32>
    %156 = arith.addf %155, %154 : vector<16x256xf32>
    %cst_103 = arith.constant 2.000000e+00 : f32
    %157 = vector.broadcast %cst_103 : f32 to vector<16x256xf32>
    %158 = arith.mulf %157, %142 : vector<16x256xf32>
    %159 = arith.addf %156, %158 : vector<16x256xf32>
    %cst_104 = arith.constant 2.000000e+00 : f32
    %160 = vector.broadcast %cst_104 : f32 to vector<16x256xf32>
    %161 = arith.mulf %160, %141 : vector<16x256xf32>
    %162 = arith.addf %142, %161 : vector<16x256xf32>
    %cst_105 = arith.constant 2.000000e+00 : f32
    %163 = vector.broadcast %cst_105 : f32 to vector<16x256xf32>
    %164 = arith.addf %162, %163 : vector<16x256xf32>
    %165 = arith.select %144, %159, %164 : vector<16x256xi1>, vector<16x256xf32>
    %166 = arith.mulf %137, %152 : vector<16x256xf32>
    %167 = tpu.reciprocal %165 {approx = true} : vector<16x256xf32> -> vector<16x256xf32>
    %168 = arith.mulf %166, %167 : vector<16x256xf32>
    %c0_106 = arith.constant 0 : index
    %c17_107 = arith.constant 17 : index
    %169 = vector.load %arg9[%c0_106, %c17_107] : memref<16x290xf32, #tpu.memory_space<vmem>>, vector<16x256xf32>
    tpu.vector_store %arg9[%c0_106, %c17_107], %168 {strides = array<i32>} : memref<16x290xf32, #tpu.memory_space<vmem>>, vector<16x256xf32>,
    %c0_108 = arith.constant 0 : index
    %c0_109 = arith.constant 0 : index
    %170 = vector.load %arg9[%c0_108, %c0_109] : memref<16x290xf32, #tpu.memory_space<vmem>>, vector<16x256xf32>
    %171 = vector.broadcast %25 : vector<1x256xf32> to vector<16x256xf32>
    %172 = arith.mulf %170, %171 : vector<16x256xf32>
    %c0_110 = arith.constant 0 : index
    %c0_111 = arith.constant 0 : index
    %173 = vector.load %arg10[%c0_110, %c0_111] : memref<144x256xf32, #tpu.memory_space<vmem>>, vector<16x256xf32>
    tpu.vector_store %arg10[%c0_110, %c0_111], %172 {strides = array<i32>} : memref<144x256xf32, #tpu.memory_space<vmem>>, vector<16x256xf32>,
    %c0_112 = arith.constant 0 : index
    %c1_113 = arith.constant 1 : index
    %174 = vector.load %arg9[%c0_112, %c1_113] : memref<16x290xf32, #tpu.memory_space<vmem>>, vector<16x256xf32>
    %c16_114 = arith.constant 16 : index
    %c0_115 = arith.constant 0 : index
    %175 = vector.load %arg10[%c16_114, %c0_115] : memref<144x256xf32, #tpu.memory_space<vmem>>, vector<16x256xf32>
    tpu.vector_store %arg10[%c16_114, %c0_115], %174 {strides = array<i32>} : memref<144x256xf32, #tpu.memory_space<vmem>>, vector<16x256xf32>,
    %c0_116 = arith.constant 0 : index
    %c2_117 = arith.constant 2 : index
    %176 = vector.load %arg9[%c0_116, %c2_117] : memref<16x290xf32, #tpu.memory_space<vmem>>, vector<16x256xf32>
    %177 = vector.broadcast %30 : vector<1x256xf32> to vector<16x256xf32>
    %178 = arith.mulf %176, %177 : vector<16x256xf32>
    %c32_118 = arith.constant 32 : index
    %c0_119 = arith.constant 0 : index
    %179 = vector.load %arg10[%c32_118, %c0_119] : memref<144x256xf32, #tpu.memory_space<vmem>>, vector<16x256xf32>
    tpu.vector_store %arg10[%c32_118, %c0_119], %178 {strides = array<i32>} : memref<144x256xf32, #tpu.memory_space<vmem>>, vector<16x256xf32>,
    %c0_120 = arith.constant 0 : index
    %c16_121 = arith.constant 16 : index
    %180 = vector.load %arg9[%c0_120, %c16_121] : memref<16x290xf32, #tpu.memory_space<vmem>>, vector<16x256xf32>
    %181 = vector.broadcast %25 : vector<1x256xf32> to vector<16x256xf32>
    %182 = arith.mulf %180, %181 : vector<16x256xf32>
    %c48_122 = arith.constant 48 : index
    %c0_123 = arith.constant 0 : index
    %183 = vector.load %arg10[%c48_122, %c0_123] : memref<144x256xf32, #tpu.memory_space<vmem>>, vector<16x256xf32>
    tpu.vector_store %arg10[%c48_122, %c0_123], %182 {strides = array<i32>} : memref<144x256xf32, #tpu.memory_space<vmem>>, vector<16x256xf32>,
    %c0_124 = arith.constant 0 : index
    %c17_125 = arith.constant 17 : index
    %184 = vector.load %arg9[%c0_124, %c17_125] : memref<16x290xf32, #tpu.memory_space<vmem>>, vector<16x256xf32>
    %c64_126 = arith.constant 64 : index
    %c0_127 = arith.constant 0 : index
    %185 = vector.load %arg10[%c64_126, %c0_127] : memref<144x256xf32, #tpu.memory_space<vmem>>, vector<16x256xf32>
    tpu.vector_store %arg10[%c64_126, %c0_127], %184 {strides = array<i32>} : memref<144x256xf32, #tpu.memory_space<vmem>>, vector<16x256xf32>,
    %c0_128 = arith.constant 0 : index
    %c18_129 = arith.constant 18 : index
    %186 = vector.load %arg9[%c0_128, %c18_129] : memref<16x290xf32, #tpu.memory_space<vmem>>, vector<16x256xf32>
    %187 = vector.broadcast %30 : vector<1x256xf32> to vector<16x256xf32>
    %188 = arith.mulf %186, %187 : vector<16x256xf32>
    %c80 = arith.constant 80 : index
    %c0_130 = arith.constant 0 : index
    %189 = vector.load %arg10[%c80, %c0_130] : memref<144x256xf32, #tpu.memory_space<vmem>>, vector<16x256xf32>
    tpu.vector_store %arg10[%c80, %c0_130], %188 {strides = array<i32>} : memref<144x256xf32, #tpu.memory_space<vmem>>, vector<16x256xf32>,
    %c0_131 = arith.constant 0 : index
    %c32_132 = arith.constant 32 : index
    %190 = vector.load %arg9[%c0_131, %c32_132] : memref<16x290xf32, #tpu.memory_space<vmem>>, vector<16x256xf32>
    %191 = vector.broadcast %25 : vector<1x256xf32> to vector<16x256xf32>
    %192 = arith.mulf %190, %191 : vector<16x256xf32>
    %c96 = arith.constant 96 : index
    %c0_133 = arith.constant 0 : index
    %193 = vector.load %arg10[%c96, %c0_133] : memref<144x256xf32, #tpu.memory_space<vmem>>, vector<16x256xf32>
    tpu.vector_store %arg10[%c96, %c0_133], %192 {strides = array<i32>} : memref<144x256xf32, #tpu.memory_space<vmem>>, vector<16x256xf32>,
    %c0_134 = arith.constant 0 : index
    %c33_135 = arith.constant 33 : index
    %194 = vector.load %arg9[%c0_134, %c33_135] : memref<16x290xf32, #tpu.memory_space<vmem>>, vector<16x256xf32>
    %c112 = arith.constant 112 : index
    %c0_136 = arith.constant 0 : index
    %195 = vector.load %arg10[%c112, %c0_136] : memref<144x256xf32, #tpu.memory_space<vmem>>, vector<16x256xf32>
    tpu.vector_store %arg10[%c112, %c0_136], %194 {strides = array<i32>} : memref<144x256xf32, #tpu.memory_space<vmem>>, vector<16x256xf32>,
    %c0_137 = arith.constant 0 : index
    %c34_138 = arith.constant 34 : index
    %196 = vector.load %arg9[%c0_137, %c34_138] : memref<16x290xf32, #tpu.memory_space<vmem>>, vector<16x256xf32>
    %197 = vector.broadcast %30 : vector<1x256xf32> to vector<16x256xf32>
    %198 = arith.mulf %196, %197 : vector<16x256xf32>
    %c128 = arith.constant 128 : index
    %c0_139 = arith.constant 0 : index
    %199 = vector.load %arg10[%c128, %c0_139] : memref<144x256xf32, #tpu.memory_space<vmem>>, vector<16x256xf32>
    tpu.vector_store %arg10[%c128, %c0_139], %198 {strides = array<i32>} : memref<144x256xf32, #tpu.memory_space<vmem>>, vector<16x256xf32>,
    %c0_140 = arith.constant 0 : index
    %c0_141 = arith.constant 0 : index
    %200 = vector.load %arg6[%c0_140, %c0_141] : memref<32x144xf32, #tpu.memory_space<vmem>>, vector<32x144xf32>
    %c0_142 = arith.constant 0 : index
    %c0_143 = arith.constant 0 : index
    %201 = vector.load %arg10[%c0_142, %c0_143] : memref<144x256xf32, #tpu.memory_space<vmem>>, vector<144x256xf32>
    %cst_144 = arith.constant dense<0.000000e+00> : vector<32x256xf32>
    %202 = tpu.matmul %200, %201, %cst_144 {dimension_numbers = #tpu.dot_dimension_numbers<[1], [0], [0], [1], [0, 0, 1, 1], [], []>} : vector<32x144xf32>, vector<144x256xf32>, vector<32x256xf32> -> vector<32x256xf32>
    %c0_145 = arith.constant 0 : index
    %c0_146 = arith.constant 0 : index
    %203 = vector.load %arg7[%c0_145, %c0_146] : memref<32x1xf32, #tpu.memory_space<vmem>>, vector<32x1xf32>
    %204 = vector.broadcast %203 : vector<32x1xf32> to vector<32x256xf32>
    %205 = arith.addf %202, %204 : vector<32x256xf32>
    %206 = math.absf %205 : vector<32x256xf32>
    %cst_147 = arith.constant 0.000000e+00 : f32
    %207 = vector.broadcast %cst_147 : f32 to vector<32x256xf32>
    %208 = arith.subf %207, %206 : vector<32x256xf32>
    %209 = math.exp %208 : vector<32x256xf32>
    %210 = arith.mulf %209, %209 : vector<32x256xf32>
    %cst_148 = arith.constant 0.000000e+00 : f32
    %211 = vector.broadcast %cst_148 : f32 to vector<32x256xf32>
    %212 = arith.cmpf ogt, %205, %211 : vector<32x256xf32>
    %cst_149 = arith.constant 2.000000e+00 : f32
    %213 = vector.broadcast %cst_149 : f32 to vector<32x256xf32>
    %214 = arith.mulf %213, %209 : vector<32x256xf32>
    %cst_150 = arith.constant 1.000000e+00 : f32
    %215 = vector.broadcast %cst_150 : f32 to vector<32x256xf32>
    %216 = arith.addf %215, %214 : vector<32x256xf32>
    %cst_151 = arith.constant 2.000000e+00 : f32
    %217 = vector.broadcast %cst_151 : f32 to vector<32x256xf32>
    %218 = arith.mulf %217, %209 : vector<32x256xf32>
    %219 = arith.addf %210, %218 : vector<32x256xf32>
    %220 = arith.select %212, %216, %219 : vector<32x256xi1>, vector<32x256xf32>
    %cst_152 = arith.constant 2.000000e+00 : f32
    %221 = vector.broadcast %cst_152 : f32 to vector<32x256xf32>
    %222 = arith.mulf %221, %209 : vector<32x256xf32>
    %cst_153 = arith.constant 1.000000e+00 : f32
    %223 = vector.broadcast %cst_153 : f32 to vector<32x256xf32>
    %224 = arith.addf %223, %222 : vector<32x256xf32>
    %cst_154 = arith.constant 2.000000e+00 : f32
    %225 = vector.broadcast %cst_154 : f32 to vector<32x256xf32>
    %226 = arith.mulf %225, %210 : vector<32x256xf32>
    %227 = arith.addf %224, %226 : vector<32x256xf32>
    %cst_155 = arith.constant 2.000000e+00 : f32
    %228 = vector.broadcast %cst_155 : f32 to vector<32x256xf32>
    %229 = arith.mulf %228, %209 : vector<32x256xf32>
    %230 = arith.addf %210, %229 : vector<32x256xf32>
    %cst_156 = arith.constant 2.000000e+00 : f32
    %231 = vector.broadcast %cst_156 : f32 to vector<32x256xf32>
    %232 = arith.addf %230, %231 : vector<32x256xf32>
    %233 = arith.select %212, %227, %232 : vector<32x256xi1>, vector<32x256xf32>
    %234 = arith.mulf %205, %220 : vector<32x256xf32>
    %235 = tpu.reciprocal %233 {approx = true} : vector<32x256xf32> -> vector<32x256xf32>
    %236 = arith.mulf %234, %235 : vector<32x256xf32>
    %cst_157 = arith.constant dense<0.000000e+00> : vector<32xf32>
    %237 = vector.multi_reduction <add>, %236, %cst_157 [1] : vector<32x256xf32> to vector<32xf32>
    %238 = vector.shape_cast %237 : vector<32xf32> to vector<32x1xf32>
    %cst_158 = arith.constant 2.560000e+02 : f32
    %239 = vector.broadcast %cst_158 : f32 to vector<32x1xf32>
    %240 = arith.divf %238, %239 : vector<32x1xf32>
    %c0_159 = arith.constant 0 : index
    %c0_160 = arith.constant 0 : index
    %c0_161 = arith.constant 0 : index
    %241 = vector.load %arg8[%c0_159, %c0_160, %c0_161] : memref<1x32x1xf32, #tpu.memory_space<vmem>>, vector<1x32x1xf32>
    %242 = vector.shape_cast %241 : vector<1x32x1xf32> to vector<32x1xf32>
    %243 = vector.shape_cast %240 : vector<32x1xf32> to vector<1x32x1xf32>
    tpu.vector_store %arg8[%c0_159, %c0_160, %c0_161], %243 {strides = array<i32>} : memref<1x32x1xf32, #tpu.memory_space<vmem>>, vector<1x32x1xf32>,
    return
  }
  func.func @transform_0(%arg0: i32) -> (i32, i32, i32) {
    %c0_i32 = arith.constant 0 : i32
    %c0_i32_0 = arith.constant 0 : i32
    %c0_i32_1 = arith.constant 0 : i32
    return %arg0, %c0_i32, %c0_i32_0 : i32, i32, i32
  }
  func.func @transform_1(%arg0: i32) -> (i32, i32) {
    %c0_i32 = arith.constant 0 : i32
    %c0_i32_0 = arith.constant 0 : i32
    %c0_i32_1 = arith.constant 0 : i32
    return %c0_i32, %c0_i32_0 : i32, i32
  }
  func.func @transform_2(%arg0: i32) -> (i32, i32) {
    %c0_i32 = arith.constant 0 : i32
    %c0_i32_0 = arith.constant 0 : i32
    %c0_i32_1 = arith.constant 0 : i32
    return %c0_i32, %c0_i32_0 : i32, i32
  }
  func.func @transform_3(%arg0: i32) -> (i32, i32) {
    %c0_i32 = arith.constant 0 : i32
    %c0_i32_0 = arith.constant 0 : i32
    %c0_i32_1 = arith.constant 0 : i32
    return %c0_i32, %c0_i32_0 : i32, i32
  }
  func.func @transform_4(%arg0: i32) -> (i32, i32) {
    %c0_i32 = arith.constant 0 : i32
    %c0_i32_0 = arith.constant 0 : i32
    %c0_i32_1 = arith.constant 0 : i32
    return %c0_i32, %c0_i32_0 : i32, i32
  }
  func.func @transform_5(%arg0: i32) -> (i32, i32) {
    %c0_i32 = arith.constant 0 : i32
    %c0_i32_0 = arith.constant 0 : i32
    %c0_i32_1 = arith.constant 0 : i32
    return %c0_i32, %c0_i32_0 : i32, i32
  }
  func.func @transform_6(%arg0: i32) -> (i32, i32) {
    %c0_i32 = arith.constant 0 : i32
    %c0_i32_0 = arith.constant 0 : i32
    %c0_i32_1 = arith.constant 0 : i32
    return %c0_i32, %c0_i32_0 : i32, i32
  }
  func.func @transform_7(%arg0: i32) -> (i32, i32, i32) {
    %c0_i32 = arith.constant 0 : i32
    %c0_i32_0 = arith.constant 0 : i32
    %c0_i32_1 = arith.constant 0 : i32
    return %arg0, %c0_i32, %c0_i32_0 : i32, i32, i32
  }
}

</mosaic_0001>

<llo_original>
// kernel: tpu_custom_call.1
$region0: #{tpu_custom_call.1}
  #allocation0 [shape = 'u32[]', space=smem, size = 0x4, offset = 0x4, fixed_abs, tag = 'smem constant byte address 0x4 - core index']
  #allocation1 [shape = 'u32[144,128]{1,0:T(1,128)}', space=vmem, size = 0x12000, scoped, tag = 'internal scratch']
  #allocation2 [shape = 'f32[16,290]{1,0:T(8,128)}', space=vmem, size = 0x6000, scoped, tag = 'scratch operand']
  #allocation3 [shape = 'f32[144,256]{1,0:T(8,128)}', space=vmem, size = 0x24000, scoped, tag = 'scratch operand']
  %s0 = inlined_call_operand.hbm [shape: f32[2,4,256], index: 0, kind: input, shape index: {}]
  %s1 = inlined_call_operand.vmem [shape: f32[8,36], index: 1, kind: input, shape index: {}]
  %s2 = inlined_call_operand.vmem [shape: f32[8,1], index: 2, kind: input, shape index: {}]
  %s3 = inlined_call_operand.hbm [shape: f32[16,72], index: 3, kind: input, shape index: {}]
  %s4 = inlined_call_operand.vmem [shape: f32[16,1], index: 4, kind: input, shape index: {}]
  %s5 = inlined_call_operand.vmem [shape: f32[32,144], index: 5, kind: input, shape index: {}]
  %s6 = inlined_call_operand.vmem [shape: f32[32,1], index: 6, kind: input, shape index: {}]
  %s7 = inlined_call_operand.vmem [shape: f32[2,32,1], index: 7, kind: output, shape index: {}]
  %s8 = sld [smem:[#allocation0]]
  $region69: #{tpu_custom_call.1} parent=0
    _
  %s10 = ssub.s32 1, %s8
  %s11 = scalar_select 0, %s10, %s8
  $region1: #{tpu_custom_call.1} parent=0
    #allocation4 [shape = 'u8[8192]{0}', space=vmem, size = 0x2000, scoped, tag = 'input window, operand 0']
    #allocation5 [shape = 's32[2]{0}', space=sflag, size = 0x8, scoped, tag = 'scoped memory for tpu_custom_call.1']
    #allocation6 [shape = 'u8[8192]{0}', space=vmem, size = 0x2000, scoped, tag = 'input window, operand 3, single buffered']
    #allocation7 [shape = 's32[1]{0}', space=sflag, size = 0x4, scoped, tag = 'scoped memory for tpu_custom_call.1']
    %12 = vsyncpa [#allocation5], 0
    %s13 = scalar_lea.sflag [#allocation5], 1
    %14 = vsyncpa %s13, 0
    %15 = vsyncpa [#allocation7], 0
    loop: start=0, step=1, limit=4
    $region2: #{tpu_custom_call.1} parent=1 // loop_pre_header
      _
    $region3: #{tpu_custom_call.1} parent=1 // loop_header
      %s17 = sphi 0, %s21
      %p18 = scmp.ge.s32.totalorder %s17, 4
      %s27 = sphi 0, %s29
      %s30 = sphi 0, %s27
      %s31 = sphi 0, %s30
      %s47 = sphi 0, %s31
      %s51 = sphi 0, %s51
      %s53 = sphi 0, %s51
      %s54 = sphi 0, %s53
      %s68 = sphi 0, %s54
      %s72 = sphi 0, %s72
      %s74 = sphi 0, %s72
      %s75 = sphi 0, %s74
      %s89 = sphi 0, %s75
      %s93 = sphi 0, %s93
      %s95 = sphi 0, %s93
      %s96 = sphi 0, %s95
      %s110 = sphi 0, %s96
      %s114 = sphi 0, %s114
      %s116 = sphi 0, %s114
      %s117 = sphi 0, %s116
      %s131 = sphi 0, %s117
      %s135 = sphi 0, %s135
      %s137 = sphi 0, %s135
      %s138 = sphi 0, %s137
      %s152 = sphi 0, %s138
      %s156 = sphi 0, %s156
      %s158 = sphi 0, %s156
      %s159 = sphi 0, %s158
      %s173 = sphi 0, %s159
      %s179 = sphi 0, %s181
      %s182 = sphi 0, %s179
      %s183 = sphi 0, %s182
      %s199 = sphi 0, %s183
    $region4: #{tpu_custom_call.1} parent=1 // loop_header_branch
      %20 = sbr.rel (%p18) target = $region8
    $region5: #{tpu_custom_call.1} parent=1 // loop_body
      %s22 = ssub.s32 %s17, 1
      %s23 = ssub.s32 %s17, 2
      %s24 = sadd.s32 %s17, 1
      %s25 = ssub.s32 %s17, %s24
      %p26 = scmp.eq.s32.totalorder %s25, 0
      %s28 = sadd.s32 %s27, 1
      %s29 = scalar_select %p26, %s27, %s28
      %p32 = pneg %p26
      %p33 = scmp.eq.s32.totalorder %s17, 1
      %p34 = por %p32, %p33
      %p35 = scmp.ne.s32.totalorder %s27, %s30
      %p36 = scmp.eq.s32.totalorder %s17, 0
      %p37 = por %p35, %p36
      %p38 = scmp.ne.s32.totalorder %s27, %s30
      %p39 = scmp.eq.s32.totalorder %s22, 1
      %p40 = por %p38, %p39
      %p41 = scmp.ne.s32.totalorder %s30, %s31
      %p42 = scmp.eq.s32.totalorder %s22, 0
      %p43 = por %p41, %p42
      %p44 = scmp.ne.s32.totalorder %s30, %s31
      %p45 = scmp.eq.s32.totalorder %s23, 1
      %p46 = por %p44, %p45
      %p48 = scmp.ne.s32.totalorder %s31, %s47
      %p49 = scmp.eq.s32.totalorder %s23, 0
      %p50 = por %p48, %p49
      %s52 = sadd.s32 %s51, 1
      %p55 = scmp.eq.s32.totalorder %s17, 1
      %p56 = scmp.ne.s32.totalorder %s51, %s53
      %p57 = scmp.eq.s32.totalorder %s17, 0
      %p58 = por %p56, %p57
      %p59 = scmp.ne.s32.totalorder %s51, %s53
      %p60 = scmp.eq.s32.totalorder %s22, 1
      %p61 = por %p59, %p60
      %p62 = scmp.ne.s32.totalorder %s53, %s54
      %p63 = scmp.eq.s32.totalorder %s22, 0
      %p64 = por %p62, %p63
      %p65 = scmp.ne.s32.totalorder %s53, %s54
      %p66 = scmp.eq.s32.totalorder %s23, 1
      %p67 = por %p65, %p66
      %p69 = scmp.ne.s32.totalorder %s54, %s68
      %p70 = scmp.eq.s32.totalorder %s23, 0
      %p71 = por %p69, %p70
      %s73 = sadd.s32 %s72, 1
      %p76 = scmp.eq.s32.totalorder %s17, 1
      %p77 = scmp.ne.s32.totalorder %s72, %s74
      %p78 = scmp.eq.s32.totalorder %s17, 0
      %p79 = por %p77, %p78
      %p80 = scmp.ne.s32.totalorder %s72, %s74
      %p81 = scmp.eq.s32.totalorder %s22, 1
      %p82 = por %p80, %p81
      %p83 = scmp.ne.s32.totalorder %s74, %s75
      %p84 = scmp.eq.s32.totalorder %s22, 0
      %p85 = por %p83, %p84
      %p86 = scmp.ne.s32.totalorder %s74, %s75
      %p87 = scmp.eq.s32.totalorder %s23, 1
      %p88 = por %p86, %p87
      %p90 = scmp.ne.s32.totalorder %s75, %s89
      %p91 = scmp.eq.s32.totalorder %s23, 0
      %p92 = por %p90, %p91
      %s94 = sadd.s32 %s93, 1
      %p97 = scmp.eq.s32.totalorder %s17, 1
      %p98 = scmp.ne.s32.totalorder %s93, %s95
      %p99 = scmp.eq.s32.totalorder %s17, 0
      %p100 = por %p98, %p99
      %p101 = scmp.ne.s32.totalorder %s93, %s95
      %p102 = scmp.eq.s32.totalorder %s22, 1
      %p103 = por %p101, %p102
      %p104 = scmp.ne.s32.totalorder %s95, %s96
      %p105 = scmp.eq.s32.totalorder %s22, 0
      %p106 = por %p104, %p105
      %p107 = scmp.ne.s32.totalorder %s95, %s96
      %p108 = scmp.eq.s32.totalorder %s23, 1
      %p109 = por %p107, %p108
      %p111 = scmp.ne.s32.totalorder %s96, %s110
      %p112 = scmp.eq.s32.totalorder %s23, 0
      %p113 = por %p111, %p112
      %s115 = sadd.s32 %s114, 1
      %p118 = scmp.eq.s32.totalorder %s17, 1
      %p119 = scmp.ne.s32.totalorder %s114, %s116
      %p120 = scmp.eq.s32.totalorder %s17, 0
      %p121 = por %p119, %p120
      %p122 = scmp.ne.s32.totalorder %s114, %s116
      %p123 = scmp.eq.s32.totalorder %s22, 1
      %p124 = por %p122, %p123
      %p125 = scmp.ne.s32.totalorder %s116, %s117
      %p126 = scmp.eq.s32.totalorder %s22, 0
      %p127 = por %p125, %p126
      %p128 = scmp.ne.s32.totalorder %s116, %s117
      %p129 = scmp.eq.s32.totalorder %s23, 1
      %p130 = por %p128, %p129
      %p132 = scmp.ne.s32.totalorder %s117, %s131
      %p133 = scmp.eq.s32.totalorder %s23, 0
      %p134 = por %p132, %p133
      %s136 = sadd.s32 %s135, 1
      %p139 = scmp.eq.s32.totalorder %s17, 1
      %p140 = scmp.ne.s32.totalorder %s135, %s137
      %p141 = scmp.eq.s32.totalorder %s17, 0
      %p142 = por %p140, %p141
      %p143 = scmp.ne.s32.totalorder %s135, %s137
      %p144 = scmp.eq.s32.totalorder %s22, 1
      %p145 = por %p143, %p144
      %p146 = scmp.ne.s32.totalorder %s137, %s138
      %p147 = scmp.eq.s32.totalorder %s22, 0
      %p148 = por %p146, %p147
      %p149 = scmp.ne.s32.totalorder %s137, %s138
      %p150 = scmp.eq.s32.totalorder %s23, 1
      %p151 = por %p149, %p150
      %p153 = scmp.ne.s32.totalorder %s138, %s152
      %p154 = scmp.eq.s32.totalorder %s23, 0
      %p155 = por %p153, %p154
      %s157 = sadd.s32 %s156, 1
      %p160 = scmp.eq.s32.totalorder %s17, 1
      %p161 = scmp.ne.s32.totalorder %s156, %s158
      %p162 = scmp.eq.s32.totalorder %s17, 0
      %p163 = por %p161, %p162
      %p164 = scmp.ne.s32.totalorder %s156, %s158
      %p165 = scmp.eq.s32.totalorder %s22, 1
      %p166 = por %p164, %p165
      %p167 = scmp.ne.s32.totalorder %s158, %s159
      %p168 = scmp.eq.s32.totalorder %s22, 0
      %p169 = por %p167, %p168
      %p170 = scmp.ne.s32.totalorder %s158, %s159
      %p171 = scmp.eq.s32.totalorder %s23, 1
      %p172 = por %p170, %p171
      %p174 = scmp.ne.s32.totalorder %s159, %s173
      %p175 = scmp.eq.s32.totalorder %s23, 0
      %p176 = por %p174, %p175
      %s177 = ssub.s32 %s17, %s24
      %p178 = scmp.eq.s32.totalorder %s177, 0
      %s180 = sadd.s32 %s179, 1
      %s181 = scalar_select %p178, %s179, %s180
      %p184 = pneg %p178
      %p185 = scmp.eq.s32.totalorder %s17, 1
      %p186 = por %p184, %p185
      %p187 = scmp.ne.s32.totalorder %s179, %s182
      %p188 = scmp.eq.s32.totalorder %s17, 0
      %p189 = por %p187, %p188
      %p190 = scmp.ne.s32.totalorder %s179, %s182
      %p191 = scmp.eq.s32.totalorder %s22, 1
      %p192 = por %p190, %p191
      %p193 = scmp.ne.s32.totalorder %s182, %s183
      %p194 = scmp.eq.s32.totalorder %s22, 0
      %p195 = por %p193, %p194
      %p196 = scmp.ne.s32.totalorder %s182, %s183
      %p197 = scmp.eq.s32.totalorder %s23, 1
      %p198 = por %p196, %p197
      %p200 = scmp.ne.s32.totalorder %s183, %s199
      %p201 = scmp.eq.s32.totalorder %s23, 0
      %p202 = por %p200, %p201
      %p203 = scmp.le.s32.totalorder 1, %s17
      %p204 = scmp.lt.s32.totalorder %s17, 3
      %p205 = pnand %p203, %p204
      %p206 = pneg %p205
      // Predicated region
      $region9: #{tpu_custom_call.1} parent=5 // pred_check
        _
      $region10: #{tpu_custom_call.1} parent=5 // pred_check_branch
        %208 = sbr.rel (%p205) target = $region12
      $region11: #{tpu_custom_call.1} parent=5 // pred_region
        %s209 = ssub.s32 %s17, 1
        // Predicated region
        $region13: #{tpu_custom_call.1} parent=11 // pred_check
          %p210 = pneg %p64
        $region14: #{tpu_custom_call.1} parent=11 // pred_check_branch
          %212 = sbr.rel (%p210) target = $region16
        $region15: #{tpu_custom_call.1} parent=11 // pred_region
          _
        $region16: #{tpu_custom_call.1} parent=11 // pred_fallthru
          _
        // Predicated region
        $region17: #{tpu_custom_call.1} parent=11 // pred_check
          %p213 = pneg %p85
        $region18: #{tpu_custom_call.1} parent=11 // pred_check_branch
          %215 = sbr.rel (%p213) target = $region20
        $region19: #{tpu_custom_call.1} parent=11 // pred_region
          _
        $region20: #{tpu_custom_call.1} parent=11 // pred_fallthru
          _
        // Predicated region
        $region21: #{tpu_custom_call.1} parent=11 // pred_check
          %p216 = pneg %p106
        $region22: #{tpu_custom_call.1} parent=11 // pred_check_branch
          %218 = sbr.rel (%p216) target = $region24
        $region23: #{tpu_custom_call.1} parent=11 // pred_region
          %s220 = ssub.s32 256, 256
          %221 = vsyncadd [#allocation7], %s220
          %s222 = sshll.u32 [#allocation6], 4
          %s223 = int_to_ptr.vmem [resolvable:$true] %s222
          %228 = dma.hbm_to_vmem [thread:$0]  %s3, 256, %s223, [#allocation7], 128, 128, 8
        $region24: #{tpu_custom_call.1} parent=11 // pred_fallthru
          _
        // Predicated region
        $region25: #{tpu_custom_call.1} parent=11 // pred_check
          %p229 = pneg %p127
        $region26: #{tpu_custom_call.1} parent=11 // pred_check_branch
          %231 = sbr.rel (%p229) target = $region28
        $region27: #{tpu_custom_call.1} parent=11 // pred_region
          _
        $region28: #{tpu_custom_call.1} parent=11 // pred_fallthru
          _
        // Predicated region
        $region29: #{tpu_custom_call.1} parent=11 // pred_check
          %p232 = pneg %p148
        $region30: #{tpu_custom_call.1} parent=11 // pred_check_branch
          %234 = sbr.rel (%p232) target = $region32
        $region31: #{tpu_custom_call.1} parent=11 // pred_region
          _
        $region32: #{tpu_custom_call.1} parent=11 // pred_fallthru
          _
        // Predicated region
        $region33: #{tpu_custom_call.1} parent=11 // pred_check
          %p235 = pneg %p169
        $region34: #{tpu_custom_call.1} parent=11 // pred_check_branch
          %237 = sbr.rel (%p235) target = $region36
        $region35: #{tpu_custom_call.1} parent=11 // pred_region
          _
        $region36: #{tpu_custom_call.1} parent=11 // pred_fallthru
          _
      $region12: #{tpu_custom_call.1} parent=5 // pred_fallthru
        _
      %p238 = scmp.lt.s32.totalorder %s17, 2
      // Predicated region
      $region37: #{tpu_custom_call.1} parent=5 // pred_check
        %p239 = pneg %p238
      $region38: #{tpu_custom_call.1} parent=5 // pred_check_branch
        %241 = sbr.rel (%p239) target = $region40
      $region39: #{tpu_custom_call.1} parent=5 // pred_region
        // Predicated region
        $region41: #{tpu_custom_call.1} parent=39 // pred_check
          %p242 = pneg %p37
        $region42: #{tpu_custom_call.1} parent=39 // pred_check_branch
          %244 = sbr.rel (%p242) target = $region44
        $region43: #{tpu_custom_call.1} parent=39 // pred_region
          %s245 = sand.u32 %s27, 1
          %s246 = scalar_lea.sflag [#allocation5], %s245
          %s247 = sand.u32 %s27, 1
          %s248 = smul.addr %s247, 8
          %s249 = scalar_lea.vmem [#allocation4], %s248
          %s251 = ssub.s32 128, 128
          %252 = vsyncadd %s246, %s251
          %s253 = smul.addr %s17, 2
          %s254 = smul.addr %s253, 64
          %s255 = scalar_lea.hbm %s0, %s254
          %s257 = sshll.u32 %s249, 4
          %s258 = int_to_ptr.vmem [resolvable:$true] %s257
          %260 = dma.hbm_to_vmem [thread:$0]  %s255, 128, %s258, %s246
        $region44: #{tpu_custom_call.1} parent=39 // pred_fallthru
          _
      $region40: #{tpu_custom_call.1} parent=5 // pred_fallthru
        _
      %p261 = scmp.le.s32.totalorder 1, %s17
      %p262 = scmp.lt.s32.totalorder %s17, 3
      %p263 = pnand %p261, %p262
      %p264 = pneg %p263
      // Predicated region
      $region45: #{tpu_custom_call.1} parent=5 // pred_check
        _
      $region46: #{tpu_custom_call.1} parent=5 // pred_check_branch
        %266 = sbr.rel (%p263) target = $region48
      $region47: #{tpu_custom_call.1} parent=5 // pred_region
        %s267 = ssub.s32 %s17, 1
        %s268 = sand.u32 %s30, 1
        %s269 = scalar_lea.sflag [#allocation5], %s268
        %s270 = sand.u32 %s30, 1
        %s271 = smul.addr %s270, 8
        %s272 = scalar_lea.vmem [#allocation4], %s271
        // Predicated region
        $region49: #{tpu_custom_call.1} parent=47 // pred_check
          %p273 = pneg %p43
        $region50: #{tpu_custom_call.1} parent=47 // pred_check_branch
          %275 = sbr.rel (%p273) target = $region52
        $region51: #{tpu_custom_call.1} parent=47 // pred_region
          %276 = dma.done %s269, 128
        $region52: #{tpu_custom_call.1} parent=47 // pred_fallthru
          _
        // Predicated region
        $region53: #{tpu_custom_call.1} parent=47 // pred_check
          %p277 = pneg %p106
        $region54: #{tpu_custom_call.1} parent=47 // pred_check_branch
          %279 = sbr.rel (%p277) target = $region56
        $region55: #{tpu_custom_call.1} parent=47 // pred_region
          %280 = dma.done [#allocation7], 256
        $region56: #{tpu_custom_call.1} parent=47 // pred_fallthru
          _
        %s281 = sand.u32 %s30, 1
        %s282 = scalar_lea.sflag [#allocation5], %s281
        %s283 = sand.u32 %s30, 1
        %s284 = smul.addr %s283, 8
        %s285 = scalar_lea.vmem [#allocation4], %s284
        %p286 = pneg %p43
        %p287 = pneg %p40
        %p288 = pneg %p64
        %p289 = pneg %p61
        %p290 = pneg %p85
        %p291 = pneg %p82
        %p292 = pneg %p106
        %p293 = pneg %p103
        %p294 = pneg %p127
        %p295 = pneg %p124
        %p296 = pneg %p148
        %p297 = pneg %p145
        %p298 = pneg %p169
        %p299 = pneg %p166
        %p300 = pneg %p195
        %p301 = pneg %p192
        %p302 = scmp.lt.s32.totalorder %s22, 1
        %s303 = scalar_select %p302, %s22, 1
        %s304 = smul.addr %s303, 4
        %s305 = smul.addr %s304, 8
        %s306 = scalar_lea.vmem %s7, %s305
        %p307 = scmp.lt.s32.totalorder %s22, 1
        %s308 = scalar_select %p307, %s22, 1
        %s309 = smul.addr %s308, 4
        %s310 = smul.addr %s309, 8
        %s311 = scalar_lea.vmem %s7, %s310
        %vm312 = vcmask 138240
        %313 = vst.msk [vmem:[#allocation2] sm:$0xff] %vm312, 0.0
        %314 = vst.msk [vmem:[#allocation2 + $0x18] sm:$0xff] %vm312, 0.0
        %vm315 = vcmask 277640
        %316 = vst.msk [vmem:[#allocation2 + $0x10] sm:$0xff] %vm315, 0.0
        %317 = vst.msk [vmem:[#allocation2 + $0x28] sm:$0xff] %vm315, 0.0
        %v318 = vlaneseq
        %v319 = vand.u32 %v318, 127
        %v320 = vadd.s32 %v319, 128
        %vm321 = vcmp.lt.s32.totalorder %v319, 0
        %v322 = vsub.s32 0, %v319
        %v323 = vsel %vm321, %v322, %v319
        %v324 = vshrl.u32 %v323, 4
        %v325 = vand.u32 %v323, 15
        %v326 = vsub.s32 0, %v325
        %v327 = vsel %vm321, %v326, %v325
        %vm328 = vcmp.lt.s32.totalorder %v320, 0
        %v329 = vsub.s32 0, %v320
        %v330 = vsel %vm328, %v329, %v320
        %v331 = vshrl.u32 %v330, 4
        %v332 = vand.u32 %v330, 15
        %v333 = vsub.s32 0, %v332
        %v334 = vsel %vm328, %v333, %v332
        %vm335 = vcmp.ne.s32.totalorder %v327, 0
        %vm336 = vcmp.ne.s32.totalorder %v334, 0
        %vm337 = vcmp.lt.s32.totalorder %v327, 0
        %vm338 = vcmp.lt.s32.totalorder %v334, 0
        %vm339 = vmand %vm337, %vm335
        %vm340 = vmand %vm338, %vm336
        %v341 = vadd.s32 %v327, 16
        %v342 = vadd.s32 %v334, 16
        %v343 = vsel %vm339, %v341, %v327
        %v344 = vsel %vm340, %v342, %v334
        %vm345 = vcmp.gt.s32.totalorder %v343, 0
        %vm346 = vcmp.gt.s32.totalorder %v344, 0
        %v347 = vsel %vm345, 1.0, 0.0
        %v348 = vsel %vm346, 1.0, 0.0
        %vm349 = vcmp.lt.s32.totalorder %v343, 15
        %vm350 = vcmp.lt.s32.totalorder %v344, 15
        %v351 = vsel %vm349, 1.0, 0.0
        %v352 = vsel %vm350, 1.0, 0.0
        %v353 = vld [vmem:[%s272] sm:$0xff]
        %v355 = vcombine.high %v353, %v353
        %356 = vrot.lane.b32.xlu0 %v353, 17
        %v357 = vpop.permute.xlu0 %356
        %358 = vrot.lane.b32.xlu0 %v355, 17
        %v359 = vpop.permute.xlu0 %358
        %v360 = vsel %vm312, %v357, %v359
        %vm364 = vcmask 1043592
        %365 = vst.msk [vmem:[#allocation2] sm:$0xf] %vm364, %v357
        %366 = vst [vmem:[#allocation2 + $0x8] sm:$0xf] %v360
        %vm367 = vcmask 134144
        %368 = vst.msk [vmem:[#allocation2 + $0x10] sm:$0xf] %vm367, %v359
        %v369 = vld [vmem:[#allocation2] sm:$0xf]
        %v370 = vld [vmem:[#allocation2 + $0x8] sm:$0xf]
        %v371 = vmul.f32 %v369, %v347
        %v372 = vmul.f32 %v370, %v348
        %373 = vst [vmem:[#allocation3] sm:$0xf] %v371
        %374 = vst [vmem:[#allocation3 + $0x8] sm:$0xf] %v372
        %v375 = vld [vmem:[#allocation2] sm:$0xf]
        %v376 = vld [vmem:[#allocation2 + $0x8] sm:$0xf]
        %v377 = vld [vmem:[#allocation2 + $0x10] sm:$0xf]
        %v381 = vrot.slane %v375, 4
        %v382 = vrot.slane %v376, 4
        %v383 = vrot.slane %v377, 4
        %384 = vrot.lane.b32.xlu0 %v381, 127
        %v385 = vpop.permute.xlu0 %384
        %386 = vrot.lane.b32.xlu0 %v382, 127
        %v387 = vpop.permute.xlu0 %386
        %388 = vrot.lane.b32.xlu0 %v383, 127
        %v389 = vpop.permute.xlu0 %388
        %vm390 = vcmask 1039360
        %v391 = vsel %vm390, %v385, %v387
        %v392 = vsel %vm390, %v387, %v389
        %395 = vst [vmem:[#allocation3] sm:$0xf0] %v391
        %396 = vst [vmem:[#allocation3 + $0x8] sm:$0xf0] %v392
        %v397 = vld [vmem:[#allocation2] sm:$0xf]
        %v398 = vld [vmem:[#allocation2 + $0x8] sm:$0xf]
        %v399 = vld [vmem:[#allocation2 + $0x10] sm:$0xf]
        %402 = vrot.lane.b32.xlu0 %v351, 2
        %v403 = vpop.permute.xlu0 %402
        %404 = vrot.lane.b32.xlu0 %v352, 2
        %v405 = vpop.permute.xlu0 %404
        %vm406 = vcmask 15360
        %v407 = vsel %vm406, %v403, %v405
        %v411 = vmul.f32 %v397, %v403
        %v412 = vmul.f32 %v398, %v407
        %v413 = vmul.f32 %v399, %v405
        %417 = vrot.lane.b32.xlu0 %v411, 126
        %v418 = vpop.permute.xlu0 %417
        %419 = vrot.lane.b32.xlu0 %v412, 126
        %v420 = vpop.permute.xlu0 %419
        %421 = vrot.lane.b32.xlu0 %v413, 126
        %v422 = vpop.permute.xlu0 %421
        %vm423 = vcmask 1031168
        %v424 = vsel %vm423, %v418, %v420
        %v425 = vsel %vm423, %v420, %v422
        %428 = vst [vmem:[#allocation3 + $0x10] sm:$0xf] %v424
        %429 = vst [vmem:[#allocation3 + $0x18] sm:$0xf] %v425
        %v430 = vld [vmem:[#allocation2] sm:$0xf]
        %v431 = vld [vmem:[#allocation2 + $0x8] sm:$0xf]
        %v432 = vld [vmem:[#allocation2 + $0x10] sm:$0xf]
        %435 = vrot.lane.b32.xlu0 %v347, 16
        %v436 = vpop.permute.xlu0 %435
        %437 = vrot.lane.b32.xlu0 %v348, 16
        %v438 = vpop.permute.xlu0 %437
        %vm439 = vcmask 130048
        %v440 = vsel %vm439, %v436, %v438
        %v444 = vmul.f32 %v430, %v436
        %v445 = vmul.f32 %v431, %v440
        %v446 = vmul.f32 %v432, %v438
        %v450 = vrot.slane %v444, 4
        %v451 = vrot.slane %v445, 4
        %v452 = vrot.slane %v446, 4
        %453 = vrot.lane.b32.xlu0 %v450, 112
        %v454 = vpop.permute.xlu0 %453
        %455 = vrot.lane.b32.xlu0 %v451, 112
        %v456 = vpop.permute.xlu0 %455
        %457 = vrot.lane.b32.xlu0 %v452, 112
        %v458 = vpop.permute.xlu0 %457
        %vm459 = vcmask 916480
        %v460 = vsel %vm459, %v454, %v456
        %v461 = vsel %vm459, %v456, %v458
        %464 = vst [vmem:[#allocation3 + $0x10] sm:$0xf0] %v460
        %465 = vst [vmem:[#allocation3 + $0x18] sm:$0xf0] %v461
        %v466 = vld [vmem:[#allocation2] sm:$0xf]
        %v467 = vld [vmem:[#allocation2 + $0x8] sm:$0xf]
        %v468 = vld [vmem:[#allocation2 + $0x10] sm:$0xf]
        %472 = vrot.lane.b32.xlu0 %v466, 111
        %v473 = vpop.permute.xlu0 %472
        %474 = vrot.lane.b32.xlu0 %v467, 111
        %v475 = vpop.permute.xlu0 %474
        %476 = vrot.lane.b32.xlu0 %v468, 111
        %v477 = vpop.permute.xlu0 %476
        %vm478 = vcmask 908288
        %v479 = vsel %vm478, %v473, %v475
        %v480 = vsel %vm478, %v475, %v477
        %483 = vst [vmem:[#allocation3 + $0x20] sm:$0xf] %v479
        %484 = vst [vmem:[#allocation3 + $0x28] sm:$0xf] %v480
        %v485 = vld [vmem:[#allocation2] sm:$0xf]
        %v486 = vld [vmem:[#allocation2 + $0x8] sm:$0xf]
        %v487 = vld [vmem:[#allocation2 + $0x10] sm:$0xf]
        %488 = vrot.lane.b32.xlu0 %v351, 18
        %v489 = vpop.permute.xlu0 %488
        %490 = vrot.lane.b32.xlu0 %v352, 18
        %v491 = vpop.permute.xlu0 %490
        %vm492 = vcmask 146432
        %v493 = vsel %vm492, %v489, %v491
        %v497 = vmul.f32 %v485, %v489
        %v498 = vmul.f32 %v486, %v493
        %v499 = vmul.f32 %v487, %v491
        %v503 = vrot.slane %v497, 4
        %v504 = vrot.slane %v498, 4
        %v505 = vrot.slane %v499, 4
        %506 = vrot.lane.b32.xlu0 %v503, 110
        %v507 = vpop.permute.xlu0 %506
        %508 = vrot.lane.b32.xlu0 %v504, 110
        %v509 = vpop.permute.xlu0 %508
        %510 = vrot.lane.b32.xlu0 %v505, 110
        %v511 = vpop.permute.xlu0 %510
        %vm512 = vcmask 900096
        %v513 = vsel %vm512, %v507, %v509
        %v514 = vsel %vm512, %v509, %v511
        %517 = vst [vmem:[#allocation3 + $0x20] sm:$0xf0] %v513
        %518 = vst [vmem:[#allocation3 + $0x28] sm:$0xf0] %v514
        %v519 = vld [vmem:[#allocation2] sm:$0xf]
        %v520 = vld [vmem:[#allocation2 + $0x8] sm:$0xf]
        %v521 = vld [vmem:[#allocation2 + $0x10] sm:$0xf]
        %522 = vrot.lane.b32.xlu0 %v347, 32
        %v523 = vpop.permute.xlu0 %522
        %524 = vrot.lane.b32.xlu0 %v348, 32
        %v525 = vpop.permute.xlu0 %524
        %vm526 = vcmask 261120
        %v527 = vsel %vm526, %v523, %v525
        %v531 = vmul.f32 %v519, %v523
        %v532 = vmul.f32 %v520, %v527
        %v533 = vmul.f32 %v521, %v525
        %537 = vrot.lane.b32.xlu0 %v531, 96
        %v538 = vpop.permute.xlu0 %537
        %539 = vrot.lane.b32.xlu0 %v532, 96
        %v540 = vpop.permute.xlu0 %539
        %541 = vrot.lane.b32.xlu0 %v533, 96
        %v542 = vpop.permute.xlu0 %541
        %vm543 = vcmask 785408
        %v544 = vsel %vm543, %v538, %v540
        %v545 = vsel %vm543, %v540, %v542
        %548 = vst [vmem:[#allocation3 + $0x30] sm:$0xf] %v544
        %549 = vst [vmem:[#allocation3 + $0x38] sm:$0xf] %v545
        %v550 = vld [vmem:[#allocation2] sm:$0xf]
        %v551 = vld [vmem:[#allocation2 + $0x8] sm:$0xf]
        %v552 = vld [vmem:[#allocation2 + $0x10] sm:$0xf]
        %v556 = vrot.slane %v550, 4
        %v557 = vrot.slane %v551, 4
        %v558 = vrot.slane %v552, 4
        %559 = vrot.lane.b32.xlu0 %v556, 95
        %v560 = vpop.permute.xlu0 %559
        %561 = vrot.lane.b32.xlu0 %v557, 95
        %v562 = vpop.permute.xlu0 %561
        %563 = vrot.lane.b32.xlu0 %v558, 95
        %v564 = vpop.permute.xlu0 %563
        %vm565 = vcmask 777216
        %v566 = vsel %vm565, %v560, %v562
        %v567 = vsel %vm565, %v562, %v564
        %570 = vst [vmem:[#allocation3 + $0x30] sm:$0xf0] %v566
        %571 = vst [vmem:[#allocation3 + $0x38] sm:$0xf0] %v567
        %v572 = vld [vmem:[#allocation2] sm:$0xf]
        %v573 = vld [vmem:[#allocation2 + $0x8] sm:$0xf]
        %v574 = vld [vmem:[#allocation2 + $0x10] sm:$0xf]
        %575 = vrot.lane.b32.xlu0 %v351, 34
        %v576 = vpop.permute.xlu0 %575
        %577 = vrot.lane.b32.xlu0 %v352, 34
        %v578 = vpop.permute.xlu0 %577
        %vm579 = vcmask 277504
        %v580 = vsel %vm579, %v576, %v578
        %v584 = vmul.f32 %v572, %v576
        %v585 = vmul.f32 %v573, %v580
        %v586 = vmul.f32 %v574, %v578
        %590 = vrot.lane.b32.xlu0 %v584, 94
        %v591 = vpop.permute.xlu0 %590
        %592 = vrot.lane.b32.xlu0 %v585, 94
        %v593 = vpop.permute.xlu0 %592
        %594 = vrot.lane.b32.xlu0 %v586, 94
        %v595 = vpop.permute.xlu0 %594
        %vm596 = vcmask 769024
        %v597 = vsel %vm596, %v591, %v593
        %v598 = vsel %vm596, %v593, %v595
        %601 = vst [vmem:[#allocation3 + $0x40] sm:$0xf] %v597
        %602 = vst [vmem:[#allocation3 + $0x48] sm:$0xf] %v598
        %v603 = vld [vmem:[%s1] sm:$0xff]
        %v604 = vld [vmem:[#allocation3] sm:$0xff]
        %v605 = vld [vmem:[#allocation3 + $0x8] sm:$0xff]
        %v606 = vld [vmem:[#allocation3 + $0x10] sm:$0xff]
        %v607 = vld [vmem:[#allocation3 + $0x18] sm:$0xff]
        %v608 = vld [vmem:[#allocation3 + $0x20] sm:$0xff]
        %v609 = vld [vmem:[#allocation3 + $0x28] sm:$0xff]
        %v610 = vld [vmem:[#allocation3 + $0x30] sm:$0xff]
        %v611 = vld [vmem:[#allocation3 + $0x38] sm:$0xff]
        %v612 = vld [vmem:[#allocation3 + $0x40] sm:$0xf]
        %v613 = vld [vmem:[#allocation3 + $0x48] sm:$0xf]
        %v614 = vld [vmem:[%s2] sm:$0xff]
        %616 = vset.pattern.permute.xlu0 0
        %617 = vperm.xlu0 %616, %v614
        %v618 = vpop.permute.xlu0 %617
        %vm620 = vcmask 293888
        %v622 = vsel %vm620, %v603, 0
        %vm624 = vcmask 1043456
        %v626 = vsel %vm624, %v612, 0
        %v629 = vsel %vm624, %v613, 0
        %631 = vmatprep.subr.mxu0 %v605
        %632 = vmatpush1.msra.mxu0 %v604
        %633 = vmatprep.subr.mxu0 %v607
        %634 = vmatpush1.msra.mxu0 %v606
        %635 = vmatprep.subr.mxu0 %v609
        %636 = vmatpush1.msra.mxu0 %v608
        %637 = vmatprep.subr.mxu0 %v611
        %638 = vmatpush1.msra.mxu0 %v610
        %639 = vmatprep.subr.mxu0 %v629
        %640 = vmatpush1.msra.mxu0 %v626
        %641 = vmatprep.subr.mxu0 0.0
        %642 = vmatpush1.msra.mxu0 0.0
        %643 = vmatprep.subr.mxu0 0.0
        %644 = vmatpush1.msra.mxu0 0.0
        %645 = vmatprep.subr.mxu0 0.0
        %646 = vmatpush1.msra.mxu0 0.0
        %647 = vmatprep.subr.mxu0 0.0
        %648 = vmatpush1.msra.mxu0 0.0
        %649 = vmatprep.subr.mxu0 0.0
        %650 = vmatpush1.msra.mxu0 0.0
        %651 = vmatprep.subr.mxu0 0.0
        %652 = vmatpush1.msra.mxu0 0.0
        %653 = vmatprep.subr.mxu0 0.0
        %654 = vmatpush1.msra.mxu0 0.0
        %655 = vmatprep.subr.mxu0 0.0
        %656 = vmatpush1.msra.mxu0 0.0
        %657 = vmatprep.subr.mxu0 0.0
        %658 = vmatpush1.msra.mxu0 0.0
        %659 = vmatprep.subr.mxu0 0.0
        %660 = vmatpush1.msra.mxu0 0.0
        %661 = vmatprep.subr.mxu0 0.0
        %662 = vmatpush1.msra.mxu0 0.0
        %663 = vmatprep.subr.mxu0 0.0
        %664 = vmatpush1.msra.mxu0 0.0
        %665 = vmatprep.subr.mxu0 0.0
        %666 = vmatpush1.msra.mxu0 0.0
        %667 = vmatprep.subr.mxu0 0.0
        %668 = vmatpush1.msra.mxu0 0.0
        %669 = vmatprep.subr.mxu0 0.0
        %670 = vmatpush1.msra.mxu0 0.0
        %671 = vmatprep.subr.mxu0 0.0
        %672 = vmatpush1.msra.mxu0 0.0
        %673 = vmatprep.subr.mxu0 0.0
        %674 = vmatpush1.msra.mxu0 0.0
        %675 = vmatprep.subr.mxu0 0.0
        %676 = vmatpush1.msra.mxu0 0.0
        %677 = vmatprep.subr.mxu0 0.0
        %678 = vmatpush1.msra.mxu0 0.0
        %679 = vmatprep.subr.mxu0 0.0
        %680 = vmatpush1.msra.mxu0 0.0
        %681 = vmatprep.subr.mxu0 0.0
        %682 = vmatpush1.msra.mxu0 0.0
        %683 = vmatprep.subr.mxu0 0.0
        %684 = vmatpush1.msra.mxu0 0.0
        %685 = vmatprep.subr.mxu0 0.0
        %686 = vmatpush1.msra.mxu0 0.0
        %687 = vmatprep.subr.mxu0 0.0
        %688 = vmatpush1.msra.mxu0 0.0
        %689 = vmatprep.subr.mxu0 0.0
        %690 = vmatpush1.msra.mxu0 0.0
        %691 = vmatprep.subr.mxu0 0.0
        %692 = vmatpush1.msra.mxu0 0.0
        %693 = vmatprep.subr.mxu0 0.0
        %694 = vmatpush1.msra.mxu0 0.0
        %695 = vmatprep.mubr.f32.mxu0 0.0
        %696 = vmatmul.mubr.f32.gmra.mrb[0].mxu0 %v622
        %v697 = vpop.f32.mrb[0].mxu0
        %v698 = vadd.f32 %v618, %v697
        %v699 = vpop.f32.mrb[0].mxu0
        %v700 = vadd.f32 %v618, %v699
        %701 = vdwg.mxu0
        %v702 = vand.u32 2147483647, %v698
        %v703 = vand.u32 2147483647, %v700
        %v704 = vsub.f32 0.0, %v702
        %v705 = vsub.f32 0.0, %v703
        %v706 = vmul.f32 %v704, 1.442695
        %v707 = vpow.pop %v706
        %v708 = vmul.f32 %v705, 1.442695
        %v709 = vpow.pop %v708
        %v710 = vmul.f32 %v707, %v707
        %v711 = vmul.f32 %v709, %v709
        %vm712 = vcmp.gt.f32.partialorder %v698, 0.0
        %vm713 = vcmp.gt.f32.partialorder %v700, 0.0
        %v714 = vmul.f32 %v707, 2.0
        %v715 = vmul.f32 %v709, 2.0
        %v716 = vadd.f32 %v714, 1.0
        %v717 = vadd.f32 %v715, 1.0
        %v718 = vadd.f32 %v710, %v714
        %v719 = vadd.f32 %v711, %v715
        %v720 = vsel %vm712, %v716, %v718
        %v721 = vsel %vm713, %v717, %v719
        %v722 = vmul.f32 %v710, 2.0
        %v723 = vmul.f32 %v711, 2.0
        %v724 = vadd.f32 %v716, %v722
        %v725 = vadd.f32 %v717, %v723
        %v726 = vadd.f32 %v718, 2.0
        %v727 = vadd.f32 %v719, 2.0
        %v728 = vsel %vm712, %v724, %v726
        %v729 = vsel %vm713, %v725, %v727
        %v730 = vmul.f32 %v698, %v720
        %v731 = vmul.f32 %v700, %v721
        %v732 = vrcp.pop %v728
        %v733 = vrcp.pop %v729
        %v734 = vmul.f32 %v730, %v732
        %v735 = vmul.f32 %v731, %v733
        %738 = vrot.lane.b32.xlu0 %v734, 17
        %v739 = vpop.permute.xlu0 %738
        %740 = vrot.lane.b32.xlu0 %v735, 17
        %v741 = vpop.permute.xlu0 %740
        %v742 = vsel %vm312, %v739, %v741
        %vm746 = vcmask 1047688
        %747 = vst.msk [vmem:[#allocation2] sm:$0xff] %vm746, %v739
        %748 = vst [vmem:[#allocation2 + $0x8] sm:$0xff] %v742
        %749 = vst.msk [vmem:[#allocation2 + $0x10] sm:$0xff] %vm312, %v741
        %v750 = vld [vmem:[#allocation2] sm:$0xff]
        %v751 = vld [vmem:[#allocation2 + $0x8] sm:$0xff]
        %v752 = vmul.f32 %v750, %v347
        %v753 = vmul.f32 %v751, %v348
        %754 = vst [vmem:[#allocation3] sm:$0xff] %v752
        %755 = vst [vmem:[#allocation3 + $0x8] sm:$0xff] %v753
        %v756 = vld [vmem:[#allocation2] sm:$0xff]
        %v757 = vld [vmem:[#allocation2 + $0x8] sm:$0xff]
        %v758 = vld [vmem:[#allocation2 + $0x10] sm:$0xff]
        %762 = vrot.lane.b32.xlu0 %v756, 127
        %v763 = vpop.permute.xlu0 %762
        %764 = vrot.lane.b32.xlu0 %v757, 127
        %v765 = vpop.permute.xlu0 %764
        %766 = vrot.lane.b32.xlu0 %v758, 127
        %v767 = vpop.permute.xlu0 %766
        %v768 = vsel %vm390, %v763, %v765
        %v769 = vsel %vm390, %v765, %v767
        %772 = vst [vmem:[#allocation3 + $0x10] sm:$0xff] %v768
        %773 = vst [vmem:[#allocation3 + $0x18] sm:$0xff] %v769
        %v774 = vld [vmem:[#allocation2] sm:$0xff]
        %v775 = vld [vmem:[#allocation2 + $0x8] sm:$0xff]
        %v776 = vld [vmem:[#allocation2 + $0x10] sm:$0xff]
        %v777 = vmul.f32 %v774, %v403
        %v778 = vmul.f32 %v775, %v407
        %v779 = vmul.f32 %v776, %v405
        %783 = vrot.lane.b32.xlu0 %v777, 126
        %v784 = vpop.permute.xlu0 %783
        %785 = vrot.lane.b32.xlu0 %v778, 126
        %v786 = vpop.permute.xlu0 %785
        %787 = vrot.lane.b32.xlu0 %v779, 126
        %v788 = vpop.permute.xlu0 %787
        %v789 = vsel %vm423, %v784, %v786
        %v790 = vsel %vm423, %v786, %v788
        %793 = vst [vmem:[#allocation3 + $0x20] sm:$0xff] %v789
        %794 = vst [vmem:[#allocation3 + $0x28] sm:$0xff] %v790
        %v795 = vld [vmem:[#allocation2] sm:$0xff]
        %v796 = vld [vmem:[#allocation2 + $0x8] sm:$0xff]
        %v797 = vld [vmem:[#allocation2 + $0x10] sm:$0xff]
        %v798 = vmul.f32 %v795, %v436
        %v799 = vmul.f32 %v796, %v440
        %v800 = vmul.f32 %v797, %v438
        %804 = vrot.lane.b32.xlu0 %v798, 112
        %v805 = vpop.permute.xlu0 %804
        %806 = vrot.lane.b32.xlu0 %v799, 112
        %v807 = vpop.permute.xlu0 %806
        %808 = vrot.lane.b32.xlu0 %v800, 112
        %v809 = vpop.permute.xlu0 %808
        %v810 = vsel %vm459, %v805, %v807
        %v811 = vsel %vm459, %v807, %v809
        %814 = vst [vmem:[#allocation3 + $0x30] sm:$0xff] %v810
        %815 = vst [vmem:[#allocation3 + $0x38] sm:$0xff] %v811
        %v816 = vld [vmem:[#allocation2] sm:$0xff]
        %v817 = vld [vmem:[#allocation2 + $0x8] sm:$0xff]
        %v818 = vld [vmem:[#allocation2 + $0x10] sm:$0xff]
        %822 = vrot.lane.b32.xlu0 %v816, 111
        %v823 = vpop.permute.xlu0 %822
        %824 = vrot.lane.b32.xlu0 %v817, 111
        %v825 = vpop.permute.xlu0 %824
        %826 = vrot.lane.b32.xlu0 %v818, 111
        %v827 = vpop.permute.xlu0 %826
        %v828 = vsel %vm478, %v823, %v825
        %v829 = vsel %vm478, %v825, %v827
        %832 = vst [vmem:[#allocation3 + $0x40] sm:$0xff] %v828
        %833 = vst [vmem:[#allocation3 + $0x48] sm:$0xff] %v829
        %v834 = vld [vmem:[#allocation2] sm:$0xff]
        %v835 = vld [vmem:[#allocation2 + $0x8] sm:$0xff]
        %v836 = vld [vmem:[#allocation2 + $0x10] sm:$0xff]
        %v837 = vmul.f32 %v834, %v489
        %v838 = vmul.f32 %v835, %v493
        %v839 = vmul.f32 %v836, %v491
        %843 = vrot.lane.b32.xlu0 %v837, 110
        %v844 = vpop.permute.xlu0 %843
        %845 = vrot.lane.b32.xlu0 %v838, 110
        %v846 = vpop.permute.xlu0 %845
        %847 = vrot.lane.b32.xlu0 %v839, 110
        %v848 = vpop.permute.xlu0 %847
        %v849 = vsel %vm512, %v844, %v846
        %v850 = vsel %vm512, %v846, %v848
        %853 = vst [vmem:[#allocation3 + $0x50] sm:$0xff] %v849
        %854 = vst [vmem:[#allocation3 + $0x58] sm:$0xff] %v850
        %v855 = vld [vmem:[#allocation2] sm:$0xff]
        %v856 = vld [vmem:[#allocation2 + $0x8] sm:$0xff]
        %v857 = vld [vmem:[#allocation2 + $0x10] sm:$0xff]
        %v858 = vmul.f32 %v855, %v523
        %v859 = vmul.f32 %v856, %v527
        %v860 = vmul.f32 %v857, %v525
        %864 = vrot.lane.b32.xlu0 %v858, 96
        %v865 = vpop.permute.xlu0 %864
        %866 = vrot.lane.b32.xlu0 %v859, 96
        %v867 = vpop.permute.xlu0 %866
        %868 = vrot.lane.b32.xlu0 %v860, 96
        %v869 = vpop.permute.xlu0 %868
        %v870 = vsel %vm543, %v865, %v867
        %v871 = vsel %vm543, %v867, %v869
        %874 = vst [vmem:[#allocation3 + $0x60] sm:$0xff] %v870
        %875 = vst [vmem:[#allocation3 + $0x68] sm:$0xff] %v871
        %v876 = vld [vmem:[#allocation2] sm:$0xff]
        %v877 = vld [vmem:[#allocation2 + $0x8] sm:$0xff]
        %v878 = vld [vmem:[#allocation2 + $0x10] sm:$0xff]
        %882 = vrot.lane.b32.xlu0 %v876, 95
        %v883 = vpop.permute.xlu0 %882
        %884 = vrot.lane.b32.xlu0 %v877, 95
        %v885 = vpop.permute.xlu0 %884
        %886 = vrot.lane.b32.xlu0 %v878, 95
        %v887 = vpop.permute.xlu0 %886
        %v888 = vsel %vm565, %v883, %v885
        %v889 = vsel %vm565, %v885, %v887
        %892 = vst [vmem:[#allocation3 + $0x70] sm:$0xff] %v888
        %893 = vst [vmem:[#allocation3 + $0x78] sm:$0xff] %v889
        %v894 = vld [vmem:[#allocation2] sm:$0xff]
        %v895 = vld [vmem:[#allocation2 + $0x8] sm:$0xff]
        %v896 = vld [vmem:[#allocation2 + $0x10] sm:$0xff]
        %v897 = vmul.f32 %v894, %v576
        %v898 = vmul.f32 %v895, %v580
        %v899 = vmul.f32 %v896, %v578
        %903 = vrot.lane.b32.xlu0 %v897, 94
        %v904 = vpop.permute.xlu0 %903
        %905 = vrot.lane.b32.xlu0 %v898, 94
        %v906 = vpop.permute.xlu0 %905
        %907 = vrot.lane.b32.xlu0 %v899, 94
        %v908 = vpop.permute.xlu0 %907
        %v909 = vsel %vm596, %v904, %v906
        %v910 = vsel %vm596, %v906, %v908
        %913 = vst [vmem:[#allocation3 + $0x80] sm:$0xff] %v909
        %914 = vst [vmem:[#allocation3 + $0x88] sm:$0xff] %v910
        %v915 = vld [vmem:[#allocation6] sm:$0xff]
        %v916 = vld [vmem:[#allocation6 + $0x8] sm:$0xff]
        %v917 = vld [vmem:[#allocation3] sm:$0xff]
        %v918 = vld [vmem:[#allocation3 + $0x8] sm:$0xff]
        %v919 = vld [vmem:[#allocation3 + $0x10] sm:$0xff]
        %v920 = vld [vmem:[#allocation3 + $0x18] sm:$0xff]
        %v921 = vld [vmem:[#allocation3 + $0x20] sm:$0xff]
        %v922 = vld [vmem:[#allocation3 + $0x28] sm:$0xff]
        %v923 = vld [vmem:[#allocation3 + $0x30] sm:$0xff]
        %v924 = vld [vmem:[#allocation3 + $0x38] sm:$0xff]
        %v925 = vld [vmem:[#allocation3 + $0x40] sm:$0xff]
        %v926 = vld [vmem:[#allocation3 + $0x48] sm:$0xff]
        %v927 = vld [vmem:[#allocation3 + $0x50] sm:$0xff]
        %v928 = vld [vmem:[#allocation3 + $0x58] sm:$0xff]
        %v929 = vld [vmem:[#allocation3 + $0x60] sm:$0xff]
        %v930 = vld [vmem:[#allocation3 + $0x68] sm:$0xff]
        %v931 = vld [vmem:[#allocation3 + $0x70] sm:$0xff]
        %v932 = vld [vmem:[#allocation3 + $0x78] sm:$0xff]
        %v933 = vld [vmem:[#allocation3 + $0x80] sm:$0xff]
        %v934 = vld [vmem:[#allocation3 + $0x88] sm:$0xff]
        %v935 = vld [vmem:[%s4] sm:$0xff]
        %v936 = vld [vmem:[%s4 + $0x8] sm:$0xff]
        %938 = vset.pattern.permute.xlu0 0
        %939 = vperm.xlu0 %938, %v935
        %v940 = vpop.permute.xlu0 %939
        %943 = vset.pattern.permute.xlu0 0
        %944 = vperm.xlu0 %943, %v936
        %v945 = vpop.permute.xlu0 %944
        %vm947 = vcmask 588800
        %v949 = vsel %vm947, %v915, 0
        %v952 = vsel %vm947, %v916, 0
        %954 = vmatprep.subr.mxu0 %v918
        %955 = vmatpush1.msra.mxu0 %v917
        %956 = vmatprep.subr.mxu0 %v920
        %957 = vmatpush1.msra.mxu0 %v919
        %958 = vmatprep.subr.mxu0 %v922
        %959 = vmatpush1.msra.mxu0 %v921
        %960 = vmatprep.subr.mxu0 %v924
        %961 = vmatpush1.msra.mxu0 %v923
        %962 = vmatprep.subr.mxu0 %v926
        %963 = vmatpush1.msra.mxu0 %v925
        %964 = vmatprep.subr.mxu0 %v928
        %965 = vmatpush1.msra.mxu0 %v927
        %966 = vmatprep.subr.mxu0 %v930
        %967 = vmatpush1.msra.mxu0 %v929
        %968 = vmatprep.subr.mxu0 %v932
        %969 = vmatpush1.msra.mxu0 %v931
        %970 = vmatprep.subr.mxu0 %v934
        %971 = vmatpush1.msra.mxu0 %v933
        %972 = vmatprep.subr.mxu0 0.0
        %973 = vmatpush1.msra.mxu0 0.0
        %974 = vmatprep.subr.mxu0 0.0
        %975 = vmatpush1.msra.mxu0 0.0
        %976 = vmatprep.subr.mxu0 0.0
        %977 = vmatpush1.msra.mxu0 0.0
        %978 = vmatprep.subr.mxu0 0.0
        %979 = vmatpush1.msra.mxu0 0.0
        %980 = vmatprep.subr.mxu0 0.0
        %981 = vmatpush1.msra.mxu0 0.0
        %982 = vmatprep.subr.mxu0 0.0
        %983 = vmatpush1.msra.mxu0 0.0
        %984 = vmatprep.subr.mxu0 0.0
        %985 = vmatpush1.msra.mxu0 0.0
        %986 = vmatprep.subr.mxu0 0.0
        %987 = vmatpush1.msra.mxu0 0.0
        %988 = vmatprep.subr.mxu0 0.0
        %989 = vmatpush1.msra.mxu0 0.0
        %990 = vmatprep.subr.mxu0 0.0
        %991 = vmatpush1.msra.mxu0 0.0
        %992 = vmatprep.subr.mxu0 0.0
        %993 = vmatpush1.msra.mxu0 0.0
        %994 = vmatprep.subr.mxu0 0.0
        %995 = vmatpush1.msra.mxu0 0.0
        %996 = vmatprep.subr.mxu0 0.0
        %997 = vmatpush1.msra.mxu0 0.0
        %998 = vmatprep.subr.mxu0 0.0
        %999 = vmatpush1.msra.mxu0 0.0
        %1000 = vmatprep.subr.mxu0 0.0
        %1001 = vmatpush1.msra.mxu0 0.0
        %1002 = vmatprep.subr.mxu0 0.0
        %1003 = vmatpush1.msra.mxu0 0.0
        %1004 = vmatprep.subr.mxu0 0.0
        %1005 = vmatpush1.msra.mxu0 0.0
        %1006 = vmatprep.subr.mxu0 0.0
        %1007 = vmatpush1.msra.mxu0 0.0
        %1008 = vmatprep.subr.mxu0 0.0
        %1009 = vmatpush1.msra.mxu0 0.0
        %1010 = vmatprep.subr.mxu0 0.0
        %1011 = vmatpush1.msra.mxu0 0.0
        %1012 = vmatprep.subr.mxu0 0.0
        %1013 = vmatpush1.msra.mxu0 0.0
        %1014 = vmatprep.subr.mxu0 0.0
        %1015 = vmatpush1.msra.mxu0 0.0
        %1016 = vmatprep.subr.mxu0 0.0
        %1017 = vmatpush1.msra.mxu0 0.0
        %1018 = vmatprep.mubr.f32.mxu0 0.0
        %1019 = vmatmul.mubr.f32.gmra.mrb[0].mxu0 %v949
        %v1020 = vpop.f32.mrb[0].mxu0
        %v1021 = vadd.f32 %v940, %v1020
        %v1022 = vpop.f32.mrb[0].mxu0
        %v1023 = vadd.f32 %v940, %v1022
        %1024 = vmatprep.mubr.f32.mxu0 0.0
        %1025 = vmatmul.mubr.f32.gmra.mrb[0].mxu0 %v952
        %v1026 = vpop.f32.mrb[0].mxu0
        %v1027 = vadd.f32 %v945, %v1026
        %v1028 = vpop.f32.mrb[0].mxu0
        %v1029 = vadd.f32 %v945, %v1028
        %1030 = vdwg.mxu0
        %v1031 = vand.u32 2147483647, %v1021
        %v1032 = vand.u32 2147483647, %v1023
        %v1033 = vand.u32 2147483647, %v1027
        %v1034 = vand.u32 2147483647, %v1029
        %v1035 = vsub.f32 0.0, %v1031
        %v1036 = vsub.f32 0.0, %v1032
        %v1037 = vsub.f32 0.0, %v1033
        %v1038 = vsub.f32 0.0, %v1034
        %v1039 = vmul.f32 %v1035, 1.442695
        %v1040 = vpow.pop %v1039
        %v1041 = vmul.f32 %v1036, 1.442695
        %v1042 = vpow.pop %v1041
        %v1043 = vmul.f32 %v1037, 1.442695
        %v1044 = vpow.pop %v1043
        %v1045 = vmul.f32 %v1038, 1.442695
        %v1046 = vpow.pop %v1045
        %v1047 = vmul.f32 %v1040, %v1040
        %v1048 = vmul.f32 %v1042, %v1042
        %v1049 = vmul.f32 %v1044, %v1044
        %v1050 = vmul.f32 %v1046, %v1046
        %vm1051 = vcmp.gt.f32.partialorder %v1021, 0.0
        %vm1052 = vcmp.gt.f32.partialorder %v1023, 0.0
        %vm1053 = vcmp.gt.f32.partialorder %v1027, 0.0
        %vm1054 = vcmp.gt.f32.partialorder %v1029, 0.0
        %v1055 = vmul.f32 %v1040, 2.0
        %v1056 = vmul.f32 %v1042, 2.0
        %v1057 = vmul.f32 %v1044, 2.0
        %v1058 = vmul.f32 %v1046, 2.0
        %v1059 = vadd.f32 %v1055, 1.0
        %v1060 = vadd.f32 %v1056, 1.0
        %v1061 = vadd.f32 %v1057, 1.0
        %v1062 = vadd.f32 %v1058, 1.0
        %v1063 = vadd.f32 %v1047, %v1055
        %v1064 = vadd.f32 %v1048, %v1056
        %v1065 = vadd.f32 %v1049, %v1057
        %v1066 = vadd.f32 %v1050, %v1058
        %v1067 = vsel %vm1051, %v1059, %v1063
        %v1068 = vsel %vm1052, %v1060, %v1064
        %v1069 = vsel %vm1053, %v1061, %v1065
        %v1070 = vsel %vm1054, %v1062, %v1066
        %v1071 = vmul.f32 %v1047, 2.0
        %v1072 = vmul.f32 %v1048, 2.0
        %v1073 = vmul.f32 %v1049, 2.0
        %v1074 = vmul.f32 %v1050, 2.0
        %v1075 = vadd.f32 %v1059, %v1071
        %v1076 = vadd.f32 %v1060, %v1072
        %v1077 = vadd.f32 %v1061, %v1073
        %v1078 = vadd.f32 %v1062, %v1074
        %v1079 = vadd.f32 %v1063, 2.0
        %v1080 = vadd.f32 %v1064, 2.0
        %v1081 = vadd.f32 %v1065, 2.0
        %v1082 = vadd.f32 %v1066, 2.0
        %v1083 = vsel %vm1051, %v1075, %v1079
        %v1084 = vsel %vm1052, %v1076, %v1080
        %v1085 = vsel %vm1053, %v1077, %v1081
        %v1086 = vsel %vm1054, %v1078, %v1082
        %v1087 = vmul.f32 %v1021, %v1067
        %v1088 = vmul.f32 %v1023, %v1068
        %v1089 = vmul.f32 %v1027, %v1069
        %v1090 = vmul.f32 %v1029, %v1070
        %v1091 = vrcp.pop %v1083
        %v1092 = vrcp.pop %v1084
        %v1093 = vrcp.pop %v1085
        %v1094 = vrcp.pop %v1086
        %v1095 = vmul.f32 %v1087, %v1091
        %v1096 = vmul.f32 %v1088, %v1092
        %v1097 = vmul.f32 %v1089, %v1093
        %v1098 = vmul.f32 %v1090, %v1094
        %1103 = vrot.lane.b32.xlu0 %v1095, 17
        %v1104 = vpop.permute.xlu0 %1103
        %1105 = vrot.lane.b32.xlu0 %v1096, 17
        %v1106 = vpop.permute.xlu0 %1105
        %1107 = vrot.lane.b32.xlu0 %v1097, 17
        %v1108 = vpop.permute.xlu0 %1107
        %1109 = vrot.lane.b32.xlu0 %v1098, 17
        %v1110 = vpop.permute.xlu0 %1109
        %v1111 = vsel %vm312, %v1104, %v1106
        %v1112 = vsel %vm312, %v1108, %v1110
        %1119 = vst.msk [vmem:[#allocation2] sm:$0xff] %vm746, %v1104
        %1120 = vst [vmem:[#allocation2 + $0x8] sm:$0xff] %v1111
        %1121 = vst.msk [vmem:[#allocation2 + $0x10] sm:$0xff] %vm312, %v1106
        %1122 = vst.msk [vmem:[#allocation2 + $0x18] sm:$0xff] %vm746, %v1108
        %1123 = vst [vmem:[#allocation2 + $0x20] sm:$0xff] %v1112
        %1124 = vst.msk [vmem:[#allocation2 + $0x28] sm:$0xff] %vm312, %v1110
        %v1125 = vld [vmem:[#allocation2] sm:$0xff]
        %v1126 = vld [vmem:[#allocation2 + $0x8] sm:$0xff]
        %v1127 = vld [vmem:[#allocation2 + $0x18] sm:$0xff]
        %v1128 = vld [vmem:[#allocation2 + $0x20] sm:$0xff]
        %v1129 = vmul.f32 %v1125, %v347
        %v1130 = vmul.f32 %v1126, %v348
        %v1131 = vmul.f32 %v1127, %v347
        %v1132 = vmul.f32 %v1128, %v348
        %1133 = vst [vmem:[#allocation3] sm:$0xff] %v1129
        %1134 = vst [vmem:[#allocation3 + $0x8] sm:$0xff] %v1130
        %1135 = vst [vmem:[#allocation3 + $0x10] sm:$0xff] %v1131
        %1136 = vst [vmem:[#allocation3 + $0x18] sm:$0xff] %v1132
        %v1137 = vld [vmem:[#allocation2] sm:$0xff]
        %v1138 = vld [vmem:[#allocation2 + $0x8] sm:$0xff]
        %v1139 = vld [vmem:[#allocation2 + $0x10] sm:$0xff]
        %v1140 = vld [vmem:[#allocation2 + $0x18] sm:$0xff]
        %v1141 = vld [vmem:[#allocation2 + $0x20] sm:$0xff]
        %v1142 = vld [vmem:[#allocation2 + $0x28] sm:$0xff]
        %1149 = vrot.lane.b32.xlu0 %v1137, 127
        %v1150 = vpop.permute.xlu0 %1149
        %1151 = vrot.lane.b32.xlu0 %v1138, 127
        %v1152 = vpop.permute.xlu0 %1151
        %1153 = vrot.lane.b32.xlu0 %v1139, 127
        %v1154 = vpop.permute.xlu0 %1153
        %1155 = vrot.lane.b32.xlu0 %v1140, 127
        %v1156 = vpop.permute.xlu0 %1155
        %1157 = vrot.lane.b32.xlu0 %v1141, 127
        %v1158 = vpop.permute.xlu0 %1157
        %1159 = vrot.lane.b32.xlu0 %v1142, 127
        %v1160 = vpop.permute.xlu0 %1159
        %v1161 = vsel %vm390, %v1150, %v1152
        %v1162 = vsel %vm390, %v1152, %v1154
        %v1163 = vsel %vm390, %v1156, %v1158
        %v1164 = vsel %vm390, %v1158, %v1160
        %1169 = vst [vmem:[#allocation3 + $0x20] sm:$0xff] %v1161
        %1170 = vst [vmem:[#allocation3 + $0x28] sm:$0xff] %v1162
        %1171 = vst [vmem:[#allocation3 + $0x30] sm:$0xff] %v1163
        %1172 = vst [vmem:[#allocation3 + $0x38] sm:$0xff] %v1164
        %v1173 = vld [vmem:[#allocation2] sm:$0xff]
        %v1174 = vld [vmem:[#allocation2 + $0x8] sm:$0xff]
        %v1175 = vld [vmem:[#allocation2 + $0x10] sm:$0xff]
        %v1176 = vld [vmem:[#allocation2 + $0x18] sm:$0xff]
        %v1177 = vld [vmem:[#allocation2 + $0x20] sm:$0xff]
        %v1178 = vld [vmem:[#allocation2 + $0x28] sm:$0xff]
        %v1179 = vmul.f32 %v1173, %v403
        %v1180 = vmul.f32 %v1174, %v407
        %v1181 = vmul.f32 %v1175, %v405
        %v1182 = vmul.f32 %v1176, %v403
        %v1183 = vmul.f32 %v1177, %v407
        %v1184 = vmul.f32 %v1178, %v405
        %1191 = vrot.lane.b32.xlu0 %v1179, 126
        %v1192 = vpop.permute.xlu0 %1191
        %1193 = vrot.lane.b32.xlu0 %v1180, 126
        %v1194 = vpop.permute.xlu0 %1193
        %1195 = vrot.lane.b32.xlu0 %v1181, 126
        %v1196 = vpop.permute.xlu0 %1195
        %1197 = vrot.lane.b32.xlu0 %v1182, 126
        %v1198 = vpop.permute.xlu0 %1197
        %1199 = vrot.lane.b32.xlu0 %v1183, 126
        %v1200 = vpop.permute.xlu0 %1199
        %1201 = vrot.lane.b32.xlu0 %v1184, 126
        %v1202 = vpop.permute.xlu0 %1201
        %v1203 = vsel %vm423, %v1192, %v1194
        %v1204 = vsel %vm423, %v1194, %v1196
        %v1205 = vsel %vm423, %v1198, %v1200
        %v1206 = vsel %vm423, %v1200, %v1202
        %1211 = vst [vmem:[#allocation3 + $0x40] sm:$0xff] %v1203
        %1212 = vst [vmem:[#allocation3 + $0x48] sm:$0xff] %v1204
        %1213 = vst [vmem:[#allocation3 + $0x50] sm:$0xff] %v1205
        %1214 = vst [vmem:[#allocation3 + $0x58] sm:$0xff] %v1206
        %v1215 = vld [vmem:[#allocation2] sm:$0xff]
        %v1216 = vld [vmem:[#allocation2 + $0x8] sm:$0xff]
        %v1217 = vld [vmem:[#allocation2 + $0x10] sm:$0xff]
        %v1218 = vld [vmem:[#allocation2 + $0x18] sm:$0xff]
        %v1219 = vld [vmem:[#allocation2 + $0x20] sm:$0xff]
        %v1220 = vld [vmem:[#allocation2 + $0x28] sm:$0xff]
        %v1221 = vmul.f32 %v1215, %v436
        %v1222 = vmul.f32 %v1216, %v440
        %v1223 = vmul.f32 %v1217, %v438
        %v1224 = vmul.f32 %v1218, %v436
        %v1225 = vmul.f32 %v1219, %v440
        %v1226 = vmul.f32 %v1220, %v438
        %1233 = vrot.lane.b32.xlu0 %v1221, 112
        %v1234 = vpop.permute.xlu0 %1233
        %1235 = vrot.lane.b32.xlu0 %v1222, 112
        %v1236 = vpop.permute.xlu0 %1235
        %1237 = vrot.lane.b32.xlu0 %v1223, 112
        %v1238 = vpop.permute.xlu0 %1237
        %1239 = vrot.lane.b32.xlu0 %v1224, 112
        %v1240 = vpop.permute.xlu0 %1239
        %1241 = vrot.lane.b32.xlu0 %v1225, 112
        %v1242 = vpop.permute.xlu0 %1241
        %1243 = vrot.lane.b32.xlu0 %v1226, 112
        %v1244 = vpop.permute.xlu0 %1243
        %v1245 = vsel %vm459, %v1234, %v1236
        %v1246 = vsel %vm459, %v1236, %v1238
        %v1247 = vsel %vm459, %v1240, %v1242
        %v1248 = vsel %vm459, %v1242, %v1244
        %1253 = vst [vmem:[#allocation3 + $0x60] sm:$0xff] %v1245
        %1254 = vst [vmem:[#allocation3 + $0x68] sm:$0xff] %v1246
        %1255 = vst [vmem:[#allocation3 + $0x70] sm:$0xff] %v1247
        %1256 = vst [vmem:[#allocation3 + $0x78] sm:$0xff] %v1248
        %v1257 = vld [vmem:[#allocation2] sm:$0xff]
        %v1258 = vld [vmem:[#allocation2 + $0x8] sm:$0xff]
        %v1259 = vld [vmem:[#allocation2 + $0x10] sm:$0xff]
        %v1260 = vld [vmem:[#allocation2 + $0x18] sm:$0xff]
        %v1261 = vld [vmem:[#allocation2 + $0x20] sm:$0xff]
        %v1262 = vld [vmem:[#allocation2 + $0x28] sm:$0xff]
        %1269 = vrot.lane.b32.xlu0 %v1257, 111
        %v1270 = vpop.permute.xlu0 %1269
        %1271 = vrot.lane.b32.xlu0 %v1258, 111
        %v1272 = vpop.permute.xlu0 %1271
        %1273 = vrot.lane.b32.xlu0 %v1259, 111
        %v1274 = vpop.permute.xlu0 %1273
        %1275 = vrot.lane.b32.xlu0 %v1260, 111
        %v1276 = vpop.permute.xlu0 %1275
        %1277 = vrot.lane.b32.xlu0 %v1261, 111
        %v1278 = vpop.permute.xlu0 %1277
        %1279 = vrot.lane.b32.xlu0 %v1262, 111
        %v1280 = vpop.permute.xlu0 %1279
        %v1281 = vsel %vm478, %v1270, %v1272
        %v1282 = vsel %vm478, %v1272, %v1274
        %v1283 = vsel %vm478, %v1276, %v1278
        %v1284 = vsel %vm478, %v1278, %v1280
        %1289 = vst [vmem:[#allocation3 + $0x80] sm:$0xff] %v1281
        %1290 = vst [vmem:[#allocation3 + $0x88] sm:$0xff] %v1282
        %1291 = vst [vmem:[#allocation3 + $0x90] sm:$0xff] %v1283
        %1292 = vst [vmem:[#allocation3 + $0x98] sm:$0xff] %v1284
        %v1293 = vld [vmem:[#allocation2] sm:$0xff]
        %v1294 = vld [vmem:[#allocation2 + $0x8] sm:$0xff]
        %v1295 = vld [vmem:[#allocation2 + $0x10] sm:$0xff]
        %v1296 = vld [vmem:[#allocation2 + $0x18] sm:$0xff]
        %v1297 = vld [vmem:[#allocation2 + $0x20] sm:$0xff]
        %v1298 = vld [vmem:[#allocation2 + $0x28] sm:$0xff]
        %v1299 = vmul.f32 %v1293, %v489
        %v1300 = vmul.f32 %v1294, %v493
        %v1301 = vmul.f32 %v1295, %v491
        %v1302 = vmul.f32 %v1296, %v489
        %v1303 = vmul.f32 %v1297, %v493
        %v1304 = vmul.f32 %v1298, %v491
        %1311 = vrot.lane.b32.xlu0 %v1299, 110
        %v1312 = vpop.permute.xlu0 %1311
        %1313 = vrot.lane.b32.xlu0 %v1300, 110
        %v1314 = vpop.permute.xlu0 %1313
        %1315 = vrot.lane.b32.xlu0 %v1301, 110
        %v1316 = vpop.permute.xlu0 %1315
        %1317 = vrot.lane.b32.xlu0 %v1302, 110
        %v1318 = vpop.permute.xlu0 %1317
        %1319 = vrot.lane.b32.xlu0 %v1303, 110
        %v1320 = vpop.permute.xlu0 %1319
        %1321 = vrot.lane.b32.xlu0 %v1304, 110
        %v1322 = vpop.permute.xlu0 %1321
        %v1323 = vsel %vm512, %v1312, %v1314
        %v1324 = vsel %vm512, %v1314, %v1316
        %v1325 = vsel %vm512, %v1318, %v1320
        %v1326 = vsel %vm512, %v1320, %v1322
        %1331 = vst [vmem:[#allocation3 + $0xa0] sm:$0xff] %v1323
        %1332 = vst [vmem:[#allocation3 + $0xa8] sm:$0xff] %v1324
        %1333 = vst [vmem:[#allocation3 + $0xb0] sm:$0xff] %v1325
        %1334 = vst [vmem:[#allocation3 + $0xb8] sm:$0xff] %v1326
        %v1335 = vld [vmem:[#allocation2] sm:$0xff]
        %v1336 = vld [vmem:[#allocation2 + $0x8] sm:$0xff]
        %v1337 = vld [vmem:[#allocation2 + $0x10] sm:$0xff]
        %v1338 = vld [vmem:[#allocation2 + $0x18] sm:$0xff]
        %v1339 = vld [vmem:[#allocation2 + $0x20] sm:$0xff]
        %v1340 = vld [vmem:[#allocation2 + $0x28] sm:$0xff]
        %v1341 = vmul.f32 %v1335, %v523
        %v1342 = vmul.f32 %v1336, %v527
        %v1343 = vmul.f32 %v1337, %v525
        %v1344 = vmul.f32 %v1338, %v523
        %v1345 = vmul.f32 %v1339, %v527
        %v1346 = vmul.f32 %v1340, %v525
        %1353 = vrot.lane.b32.xlu0 %v1341, 96
        %v1354 = vpop.permute.xlu0 %1353
        %1355 = vrot.lane.b32.xlu0 %v1342, 96
        %v1356 = vpop.permute.xlu0 %1355
        %1357 = vrot.lane.b32.xlu0 %v1343, 96
        %v1358 = vpop.permute.xlu0 %1357
        %1359 = vrot.lane.b32.xlu0 %v1344, 96
        %v1360 = vpop.permute.xlu0 %1359
        %1361 = vrot.lane.b32.xlu0 %v1345, 96
        %v1362 = vpop.permute.xlu0 %1361
        %1363 = vrot.lane.b32.xlu0 %v1346, 96
        %v1364 = vpop.permute.xlu0 %1363
        %v1365 = vsel %vm543, %v1354, %v1356
        %v1366 = vsel %vm543, %v1356, %v1358
        %v1367 = vsel %vm543, %v1360, %v1362
        %v1368 = vsel %vm543, %v1362, %v1364
        %1373 = vst [vmem:[#allocation3 + $0xc0] sm:$0xff] %v1365
        %1374 = vst [vmem:[#allocation3 + $0xc8] sm:$0xff] %v1366
        %1375 = vst [vmem:[#allocation3 + $0xd0] sm:$0xff] %v1367
        %1376 = vst [vmem:[#allocation3 + $0xd8] sm:$0xff] %v1368
        %v1377 = vld [vmem:[#allocation2] sm:$0xff]
        %v1378 = vld [vmem:[#allocation2 + $0x8] sm:$0xff]
        %v1379 = vld [vmem:[#allocation2 + $0x10] sm:$0xff]
        %v1380 = vld [vmem:[#allocation2 + $0x18] sm:$0xff]
        %v1381 = vld [vmem:[#allocation2 + $0x20] sm:$0xff]
        %v1382 = vld [vmem:[#allocation2 + $0x28] sm:$0xff]
        %1389 = vrot.lane.b32.xlu0 %v1377, 95
        %v1390 = vpop.permute.xlu0 %1389
        %1391 = vrot.lane.b32.xlu0 %v1378, 95
        %v1392 = vpop.permute.xlu0 %1391
        %1393 = vrot.lane.b32.xlu0 %v1379, 95
        %v1394 = vpop.permute.xlu0 %1393
        %1395 = vrot.lane.b32.xlu0 %v1380, 95
        %v1396 = vpop.permute.xlu0 %1395
        %1397 = vrot.lane.b32.xlu0 %v1381, 95
        %v1398 = vpop.permute.xlu0 %1397
        %1399 = vrot.lane.b32.xlu0 %v1382, 95
        %v1400 = vpop.permute.xlu0 %1399
        %v1401 = vsel %vm565, %v1390, %v1392
        %v1402 = vsel %vm565, %v1392, %v1394
        %v1403 = vsel %vm565, %v1396, %v1398
        %v1404 = vsel %vm565, %v1398, %v1400
        %1409 = vst [vmem:[#allocation3 + $0xe0] sm:$0xff] %v1401
        %1410 = vst [vmem:[#allocation3 + $0xe8] sm:$0xff] %v1402
        %1411 = vst [vmem:[#allocation3 + $0xf0] sm:$0xff] %v1403
        %1412 = vst [vmem:[#allocation3 + $0xf8] sm:$0xff] %v1404
        %v1413 = vld [vmem:[#allocation2] sm:$0xff]
        %v1414 = vld [vmem:[#allocation2 + $0x8] sm:$0xff]
        %v1415 = vld [vmem:[#allocation2 + $0x10] sm:$0xff]
        %v1416 = vld [vmem:[#allocation2 + $0x18] sm:$0xff]
        %v1417 = vld [vmem:[#allocation2 + $0x20] sm:$0xff]
        %v1418 = vld [vmem:[#allocation2 + $0x28] sm:$0xff]
        %v1419 = vmul.f32 %v1413, %v576
        %v1420 = vmul.f32 %v1414, %v580
        %v1421 = vmul.f32 %v1415, %v578
        %v1422 = vmul.f32 %v1416, %v576
        %v1423 = vmul.f32 %v1417, %v580
        %v1424 = vmul.f32 %v1418, %v578
        %1431 = vrot.lane.b32.xlu0 %v1419, 94
        %v1432 = vpop.permute.xlu0 %1431
        %1433 = vrot.lane.b32.xlu0 %v1420, 94
        %v1434 = vpop.permute.xlu0 %1433
        %1435 = vrot.lane.b32.xlu0 %v1421, 94
        %v1436 = vpop.permute.xlu0 %1435
        %1437 = vrot.lane.b32.xlu0 %v1422, 94
        %v1438 = vpop.permute.xlu0 %1437
        %1439 = vrot.lane.b32.xlu0 %v1423, 94
        %v1440 = vpop.permute.xlu0 %1439
        %1441 = vrot.lane.b32.xlu0 %v1424, 94
        %v1442 = vpop.permute.xlu0 %1441
        %v1443 = vsel %vm596, %v1432, %v1434
        %v1444 = vsel %vm596, %v1434, %v1436
        %v1445 = vsel %vm596, %v1438, %v1440
        %v1446 = vsel %vm596, %v1440, %v1442
        %1451 = vst [vmem:[#allocation3 + $0x100] sm:$0xff] %v1443
        %1452 = vst [vmem:[#allocation3 + $0x108] sm:$0xff] %v1444
        %1453 = vst [vmem:[#allocation3 + $0x110] sm:$0xff] %v1445
        %1454 = vst [vmem:[#allocation3 + $0x118] sm:$0xff] %v1446
        %v1455 = vld [vmem:[%s5] sm:$0xff]
        %v1456 = vld [vmem:[%s5 + $0x8] sm:$0xff]
        %v1457 = vld [vmem:[%s5 + $0x10] sm:$0xff]
        %v1458 = vld [vmem:[%s5 + $0x18] sm:$0xff]
        %v1459 = vld [vmem:[%s5 + $0x20] sm:$0xff]
        %v1460 = vld [vmem:[%s5 + $0x28] sm:$0xff]
        %v1461 = vld [vmem:[%s5 + $0x30] sm:$0xff]
        %v1462 = vld [vmem:[%s5 + $0x38] sm:$0xff]
        %v1463 = vld [vmem:[#allocation3] sm:$0xff]
        %v1464 = vld [vmem:[#allocation3 + $0x8] sm:$0xff]
        %v1465 = vld [vmem:[#allocation3 + $0x10] sm:$0xff]
        %v1466 = vld [vmem:[#allocation3 + $0x18] sm:$0xff]
        %v1467 = vld [vmem:[#allocation3 + $0x20] sm:$0xff]
        %v1468 = vld [vmem:[#allocation3 + $0x28] sm:$0xff]
        %v1469 = vld [vmem:[#allocation3 + $0x30] sm:$0xff]
        %v1470 = vld [vmem:[#allocation3 + $0x38] sm:$0xff]
        %v1471 = vld [vmem:[#allocation3 + $0x40] sm:$0xff]
        %v1472 = vld [vmem:[#allocation3 + $0x48] sm:$0xff]
        %v1473 = vld [vmem:[#allocation3 + $0x50] sm:$0xff]
        %v1474 = vld [vmem:[#allocation3 + $0x58] sm:$0xff]
        %v1475 = vld [vmem:[#allocation3 + $0x60] sm:$0xff]
        %v1476 = vld [vmem:[#allocation3 + $0x68] sm:$0xff]
        %v1477 = vld [vmem:[#allocation3 + $0x70] sm:$0xff]
        %v1478 = vld [vmem:[#allocation3 + $0x78] sm:$0xff]
        %v1479 = vld [vmem:[#allocation3 + $0x80] sm:$0xff]
        %v1480 = vld [vmem:[#allocation3 + $0x88] sm:$0xff]
        %v1481 = vld [vmem:[#allocation3 + $0x90] sm:$0xff]
        %v1482 = vld [vmem:[#allocation3 + $0x98] sm:$0xff]
        %v1483 = vld [vmem:[#allocation3 + $0xa0] sm:$0xff]
        %v1484 = vld [vmem:[#allocation3 + $0xa8] sm:$0xff]
        %v1485 = vld [vmem:[#allocation3 + $0xb0] sm:$0xff]
        %v1486 = vld [vmem:[#allocation3 + $0xb8] sm:$0xff]
        %v1487 = vld [vmem:[#allocation3 + $0xc0] sm:$0xff]
        %v1488 = vld [vmem:[#allocation3 + $0xc8] sm:$0xff]
        %v1489 = vld [vmem:[#allocation3 + $0xd0] sm:$0xff]
        %v1490 = vld [vmem:[#allocation3 + $0xd8] sm:$0xff]
        %v1491 = vld [vmem:[#allocation3 + $0xe0] sm:$0xff]
        %v1492 = vld [vmem:[#allocation3 + $0xe8] sm:$0xff]
        %v1493 = vld [vmem:[#allocation3 + $0xf0] sm:$0xff]
        %v1494 = vld [vmem:[#allocation3 + $0xf8] sm:$0xff]
        %v1495 = vld [vmem:[#allocation3 + $0x100] sm:$0xff]
        %v1496 = vld [vmem:[#allocation3 + $0x108] sm:$0xff]
        %v1497 = vld [vmem:[#allocation3 + $0x110] sm:$0xff]
        %v1498 = vld [vmem:[#allocation3 + $0x118] sm:$0xff]
        %v1499 = vld [vmem:[%s6] sm:$0xff]
        %v1500 = vld [vmem:[%s6 + $0x8] sm:$0xff]
        %v1501 = vld [vmem:[%s6 + $0x10] sm:$0xff]
        %v1502 = vld [vmem:[%s6 + $0x18] sm:$0xff]
        %1504 = vset.pattern.permute.xlu0 0
        %1505 = vperm.xlu0 %1504, %v1499
        %v1506 = vpop.permute.xlu0 %1505
        %1509 = vset.pattern.permute.xlu0 0
        %1510 = vperm.xlu0 %1509, %v1500
        %v1511 = vpop.permute.xlu0 %1510
        %1514 = vset.pattern.permute.xlu0 0
        %1515 = vperm.xlu0 %1514, %v1501
        %v1516 = vpop.permute.xlu0 %1515
        %1519 = vset.pattern.permute.xlu0 0
        %1520 = vperm.xlu0 %1519, %v1502
        %v1521 = vpop.permute.xlu0 %1520
        %v1524 = vsel %vm439, %v1456, 0
        %v1527 = vsel %vm439, %v1458, 0
        %v1530 = vsel %vm439, %v1460, 0
        %v1533 = vsel %vm439, %v1462, 0
        %1535 = vmatprep.subr.mxu0 %v1464
        %1536 = vmatpush1.msra.mxu0 %v1463
        %1537 = vmatprep.subr.mxu0 %v1466
        %1538 = vmatpush1.msra.mxu0 %v1465
        %1539 = vmatprep.subr.mxu0 %v1468
        %1540 = vmatpush1.msra.mxu0 %v1467
        %1541 = vmatprep.subr.mxu0 %v1470
        %1542 = vmatpush1.msra.mxu0 %v1469
        %1543 = vmatprep.subr.mxu0 %v1472
        %1544 = vmatpush1.msra.mxu0 %v1471
        %1545 = vmatprep.subr.mxu0 %v1474
        %1546 = vmatpush1.msra.mxu0 %v1473
        %1547 = vmatprep.subr.mxu0 %v1476
        %1548 = vmatpush1.msra.mxu0 %v1475
        %1549 = vmatprep.subr.mxu0 %v1478
        %1550 = vmatpush1.msra.mxu0 %v1477
        %1551 = vmatprep.subr.mxu0 %v1480
        %1552 = vmatpush1.msra.mxu0 %v1479
        %1553 = vmatprep.subr.mxu0 %v1482
        %1554 = vmatpush1.msra.mxu0 %v1481
        %1555 = vmatprep.subr.mxu0 %v1484
        %1556 = vmatpush1.msra.mxu0 %v1483
        %1557 = vmatprep.subr.mxu0 %v1486
        %1558 = vmatpush1.msra.mxu0 %v1485
        %1559 = vmatprep.subr.mxu0 %v1488
        %1560 = vmatpush1.msra.mxu0 %v1487
        %1561 = vmatprep.subr.mxu0 %v1490
        %1562 = vmatpush1.msra.mxu0 %v1489
        %1563 = vmatprep.subr.mxu0 %v1492
        %1564 = vmatpush1.msra.mxu0 %v1491
        %1565 = vmatprep.subr.mxu0 %v1494
        %1566 = vmatpush1.msra.mxu0 %v1493
        %1567 = vmatprep.subr.mxu0 %v1496
        %1568 = vmatpush1.msra.mxu0 %v1495
        %1569 = vmatprep.subr.mxu0 %v1498
        %1570 = vmatpush1.msra.mxu0 %v1497
        %1571 = vmatprep.subr.mxu0 0.0
        %1572 = vmatpush1.msra.mxu0 0.0
        %1573 = vmatprep.subr.mxu0 0.0
        %1574 = vmatpush1.msra.mxu0 0.0
        %1575 = vmatprep.subr.mxu0 0.0
        %1576 = vmatpush1.msra.mxu0 0.0
        %1577 = vmatprep.subr.mxu0 0.0
        %1578 = vmatpush1.msra.mxu0 0.0
        %1579 = vmatprep.subr.mxu0 0.0
        %1580 = vmatpush1.msra.mxu0 0.0
        %1581 = vmatprep.subr.mxu0 0.0
        %1582 = vmatpush1.msra.mxu0 0.0
        %1583 = vmatprep.subr.mxu0 0.0
        %1584 = vmatpush1.msra.mxu0 0.0
        %1585 = vmatprep.subr.mxu0 0.0
        %1586 = vmatpush1.msra.mxu0 0.0
        %1587 = vmatprep.subr.mxu0 0.0
        %1588 = vmatpush1.msra.mxu0 0.0
        %1589 = vmatprep.subr.mxu0 0.0
        %1590 = vmatpush1.msra.mxu0 0.0
        %1591 = vmatprep.subr.mxu0 0.0
        %1592 = vmatpush1.msra.mxu0 0.0
        %1593 = vmatprep.subr.mxu0 0.0
        %1594 = vmatpush1.msra.mxu0 0.0
        %1595 = vmatprep.subr.mxu0 0.0
        %1596 = vmatpush1.msra.mxu0 0.0
        %1597 = vmatprep.subr.mxu0 0.0
        %1598 = vmatpush1.msra.mxu0 0.0
        %1599 = vmatprep.mubr.f32.mxu0 %v1524
        %1600 = vmatmul.mubr.f32.gmra.mrb[0].mxu0 %v1455
        %v1601 = vpop.f32.mrb[0].mxu0
        %v1602 = vadd.f32 %v1506, %v1601
        %v1603 = vpop.f32.mrb[0].mxu0
        %v1604 = vadd.f32 %v1506, %v1603
        %1605 = vmatprep.mubr.f32.mxu0 %v1527
        %1606 = vmatmul.mubr.f32.gmra.mrb[0].mxu0 %v1457
        %v1607 = vpop.f32.mrb[0].mxu0
        %v1608 = vadd.f32 %v1511, %v1607
        %v1609 = vpop.f32.mrb[0].mxu0
        %v1610 = vadd.f32 %v1511, %v1609
        %1611 = vmatprep.mubr.f32.mxu0 %v1530
        %1612 = vmatmul.mubr.f32.gmra.mrb[0].mxu0 %v1459
        %v1613 = vpop.f32.mrb[0].mxu0
        %v1614 = vadd.f32 %v1516, %v1613
        %v1615 = vpop.f32.mrb[0].mxu0
        %v1616 = vadd.f32 %v1516, %v1615
        %1617 = vmatprep.mubr.f32.mxu0 %v1533
        %1618 = vmatmul.mubr.f32.gmra.mrb[0].mxu0 %v1461
        %v1619 = vpop.f32.mrb[0].mxu0
        %v1620 = vadd.f32 %v1521, %v1619
        %v1621 = vpop.f32.mrb[0].mxu0
        %v1622 = vadd.f32 %v1521, %v1621
        %1623 = vdwg.mxu0
        %v1624 = vand.u32 2147483647, %v1602
        %v1625 = vand.u32 2147483647, %v1604
        %v1626 = vand.u32 2147483647, %v1608
        %v1627 = vand.u32 2147483647, %v1610
        %v1628 = vand.u32 2147483647, %v1614
        %v1629 = vand.u32 2147483647, %v1616
        %v1630 = vand.u32 2147483647, %v1620
        %v1631 = vand.u32 2147483647, %v1622
        %v1632 = vsub.f32 0.0, %v1624
        %v1633 = vsub.f32 0.0, %v1625
        %v1634 = vsub.f32 0.0, %v1626
        %v1635 = vsub.f32 0.0, %v1627
        %v1636 = vsub.f32 0.0, %v1628
        %v1637 = vsub.f32 0.0, %v1629
        %v1638 = vsub.f32 0.0, %v1630
        %v1639 = vsub.f32 0.0, %v1631
        %v1640 = vmul.f32 %v1632, 1.442695
        %v1641 = vpow.pop %v1640
        %v1642 = vmul.f32 %v1633, 1.442695
        %v1643 = vpow.pop %v1642
        %v1644 = vmul.f32 %v1634, 1.442695
        %v1645 = vpow.pop %v1644
        %v1646 = vmul.f32 %v1635, 1.442695
        %v1647 = vpow.pop %v1646
        %v1648 = vmul.f32 %v1636, 1.442695
        %v1649 = vpow.pop %v1648
        %v1650 = vmul.f32 %v1637, 1.442695
        %v1651 = vpow.pop %v1650
        %v1652 = vmul.f32 %v1638, 1.442695
        %v1653 = vpow.pop %v1652
        %v1654 = vmul.f32 %v1639, 1.442695
        %v1655 = vpow.pop %v1654
        %v1656 = vmul.f32 %v1641, %v1641
        %v1657 = vmul.f32 %v1643, %v1643
        %v1658 = vmul.f32 %v1645, %v1645
        %v1659 = vmul.f32 %v1647, %v1647
        %v1660 = vmul.f32 %v1649, %v1649
        %v1661 = vmul.f32 %v1651, %v1651
        %v1662 = vmul.f32 %v1653, %v1653
        %v1663 = vmul.f32 %v1655, %v1655
        %vm1664 = vcmp.gt.f32.partialorder %v1602, 0.0
        %vm1665 = vcmp.gt.f32.partialorder %v1604, 0.0
        %vm1666 = vcmp.gt.f32.partialorder %v1608, 0.0
        %vm1667 = vcmp.gt.f32.partialorder %v1610, 0.0
        %vm1668 = vcmp.gt.f32.partialorder %v1614, 0.0
        %vm1669 = vcmp.gt.f32.partialorder %v1616, 0.0
        %vm1670 = vcmp.gt.f32.partialorder %v1620, 0.0
        %vm1671 = vcmp.gt.f32.partialorder %v1622, 0.0
        %v1672 = vmul.f32 %v1641, 2.0
        %v1673 = vmul.f32 %v1643, 2.0
        %v1674 = vmul.f32 %v1645, 2.0
        %v1675 = vmul.f32 %v1647, 2.0
        %v1676 = vmul.f32 %v1649, 2.0
        %v1677 = vmul.f32 %v1651, 2.0
        %v1678 = vmul.f32 %v1653, 2.0
        %v1679 = vmul.f32 %v1655, 2.0
        %v1680 = vadd.f32 %v1672, 1.0
        %v1681 = vadd.f32 %v1673, 1.0
        %v1682 = vadd.f32 %v1674, 1.0
        %v1683 = vadd.f32 %v1675, 1.0
        %v1684 = vadd.f32 %v1676, 1.0
        %v1685 = vadd.f32 %v1677, 1.0
        %v1686 = vadd.f32 %v1678, 1.0
        %v1687 = vadd.f32 %v1679, 1.0
        %v1688 = vadd.f32 %v1656, %v1672
        %v1689 = vadd.f32 %v1657, %v1673
        %v1690 = vadd.f32 %v1658, %v1674
        %v1691 = vadd.f32 %v1659, %v1675
        %v1692 = vadd.f32 %v1660, %v1676
        %v1693 = vadd.f32 %v1661, %v1677
        %v1694 = vadd.f32 %v1662, %v1678
        %v1695 = vadd.f32 %v1663, %v1679
        %v1696 = vsel %vm1664, %v1680, %v1688
        %v1697 = vsel %vm1665, %v1681, %v1689
        %v1698 = vsel %vm1666, %v1682, %v1690
        %v1699 = vsel %vm1667, %v1683, %v1691
        %v1700 = vsel %vm1668, %v1684, %v1692
        %v1701 = vsel %vm1669, %v1685, %v1693
        %v1702 = vsel %vm1670, %v1686, %v1694
        %v1703 = vsel %vm1671, %v1687, %v1695
        %v1704 = vmul.f32 %v1656, 2.0
        %v1705 = vmul.f32 %v1657, 2.0
        %v1706 = vmul.f32 %v1658, 2.0
        %v1707 = vmul.f32 %v1659, 2.0
        %v1708 = vmul.f32 %v1660, 2.0
        %v1709 = vmul.f32 %v1661, 2.0
        %v1710 = vmul.f32 %v1662, 2.0
        %v1711 = vmul.f32 %v1663, 2.0
        %v1712 = vadd.f32 %v1680, %v1704
        %v1713 = vadd.f32 %v1681, %v1705
        %v1714 = vadd.f32 %v1682, %v1706
        %v1715 = vadd.f32 %v1683, %v1707
        %v1716 = vadd.f32 %v1684, %v1708
        %v1717 = vadd.f32 %v1685, %v1709
        %v1718 = vadd.f32 %v1686, %v1710
        %v1719 = vadd.f32 %v1687, %v1711
        %v1720 = vadd.f32 %v1688, 2.0
        %v1721 = vadd.f32 %v1689, 2.0
        %v1722 = vadd.f32 %v1690, 2.0
        %v1723 = vadd.f32 %v1691, 2.0
        %v1724 = vadd.f32 %v1692, 2.0
        %v1725 = vadd.f32 %v1693, 2.0
        %v1726 = vadd.f32 %v1694, 2.0
        %v1727 = vadd.f32 %v1695, 2.0
        %v1728 = vsel %vm1664, %v1712, %v1720
        %v1729 = vsel %vm1665, %v1713, %v1721
        %v1730 = vsel %vm1666, %v1714, %v1722
        %v1731 = vsel %vm1667, %v1715, %v1723
        %v1732 = vsel %vm1668, %v1716, %v1724
        %v1733 = vsel %vm1669, %v1717, %v1725
        %v1734 = vsel %vm1670, %v1718, %v1726
        %v1735 = vsel %vm1671, %v1719, %v1727
        %v1736 = vmul.f32 %v1602, %v1696
        %v1737 = vmul.f32 %v1604, %v1697
        %v1738 = vmul.f32 %v1608, %v1698
        %v1739 = vmul.f32 %v1610, %v1699
        %v1740 = vmul.f32 %v1614, %v1700
        %v1741 = vmul.f32 %v1616, %v1701
        %v1742 = vmul.f32 %v1620, %v1702
        %v1743 = vmul.f32 %v1622, %v1703
        %v1744 = vrcp.pop %v1728
        %v1745 = vrcp.pop %v1729
        %v1746 = vrcp.pop %v1730
        %v1747 = vrcp.pop %v1731
        %v1748 = vrcp.pop %v1732
        %v1749 = vrcp.pop %v1733
        %v1750 = vrcp.pop %v1734
        %v1751 = vrcp.pop %v1735
        %v1752 = vmul.f32 %v1736, %v1744
        %v1753 = vmul.f32 %v1737, %v1745
        %v1754 = vmul.f32 %v1738, %v1746
        %v1755 = vmul.f32 %v1739, %v1747
        %v1756 = vmul.f32 %v1740, %v1748
        %v1757 = vmul.f32 %v1741, %v1749
        %v1758 = vmul.f32 %v1742, %v1750
        %v1759 = vmul.f32 %v1743, %v1751
        %v1760 = vadd.f32 %v1752, %v1753
        %1761 = vadd.xlane.f32.xlu0 %v1760
        %v1762 = vpop.xlane.xlu0 %1761
        %v1763 = vadd.f32 %v1754, %v1755
        %1764 = vadd.xlane.f32.xlu0 %v1763
        %v1765 = vpop.xlane.xlu0 %1764
        %v1766 = vadd.f32 %v1756, %v1757
        %1767 = vadd.xlane.f32.xlu0 %v1766
        %v1768 = vpop.xlane.xlu0 %1767
        %v1769 = vadd.f32 %v1758, %v1759
        %1770 = vadd.xlane.f32.xlu0 %v1769
        %v1771 = vpop.xlane.xlu0 %1770
        %v1772 = vrcp.pop 256.0
        %v1773 = vmul.f32 %v1762, %v1772
        %v1774 = vmul.f32 %v1765, %v1772
        %v1775 = vmul.f32 %v1768, %v1772
        %v1776 = vmul.f32 %v1771, %v1772
        %vm1777 = vcmask 7168
        %1778 = vst.msk [vmem:[%s311] sm:$0xff] %vm1777, %v1773
        %1779 = vst.msk [vmem:[%s311 + $0x8] sm:$0xff] %vm1777, %v1774
        %1780 = vst.msk [vmem:[%s311 + $0x10] sm:$0xff] %vm1777, %v1775
        %1781 = vst.msk [vmem:[%s311 + $0x18] sm:$0xff] %vm1777, %v1776
        %p1782 = scmp.lt.s32.totalorder %s22, 1
        %s1783 = scalar_select %p1782, %s22, 1
        %s1784 = smul.addr %s1783, 4
        %s1785 = smul.addr %s1784, 8
        %s1786 = scalar_lea.vmem %s7, %s1785
        // Predicated region
        $region57: #{tpu_custom_call.1} parent=47 // pred_check
          %p1787 = pneg %p192
        $region58: #{tpu_custom_call.1} parent=47 // pred_check_branch
          %1789 = sbr.rel (%p1787) target = $region60
        $region59: #{tpu_custom_call.1} parent=47 // pred_region
          _
        $region60: #{tpu_custom_call.1} parent=47 // pred_fallthru
          _
      $region48: #{tpu_custom_call.1} parent=5 // pred_fallthru
        _
      %p1790 = scmp.le.s32.totalorder 2, %s17
      // Predicated region
      $region61: #{tpu_custom_call.1} parent=5 // pred_check
        %p1791 = pneg %p1790
      $region62: #{tpu_custom_call.1} parent=5 // pred_check_branch
        %1793 = sbr.rel (%p1791) target = $region64
      $region63: #{tpu_custom_call.1} parent=5 // pred_region
        %s1794 = ssub.s32 %s17, 2
        // Predicated region
        $region65: #{tpu_custom_call.1} parent=63 // pred_check
          %p1795 = pneg %p198
        $region66: #{tpu_custom_call.1} parent=63 // pred_check_branch
          %1797 = sbr.rel (%p1795) target = $region68
        $region67: #{tpu_custom_call.1} parent=63 // pred_region
          %p1798 = scmp.lt.s32.totalorder %s23, 1
          %s1799 = scalar_select %p1798, %s23, 1
          %s1800 = smul.addr %s1799, 4
          %s1801 = smul.addr %s1800, 8
          %s1802 = scalar_lea.vmem %s7, %s1801
        $region68: #{tpu_custom_call.1} parent=63 // pred_fallthru
          _
      $region64: #{tpu_custom_call.1} parent=5 // pred_fallthru
        _
    $region6: #{tpu_custom_call.1} parent=1 // loop_footer
      %s21 = sadd.s32 1, %s17
    $region7: #{tpu_custom_call.1} parent=1 // loop_footer_branch
      %16 = sbr.rel target = $region3
    $region8: #{tpu_custom_call.1} parent=1 // loop_exit
      _
    %1803 = vsyncpa [#allocation5], 1
    %s1804 = scalar_lea.sflag [#allocation5], 1
    %1805 = vsyncpa %s1804, 1
    %1806 = vsyncpa [#allocation7], 1

</llo_original>
